<compile_context>
chip_gen: v6e
topology: v6e:2x2x1
jax: 0.10.0
libtpu: 0.0.40
codegen_flags: <defaults>
</compile_context>

<pallas_src>
import jax
import jax.numpy as jnp
from jax import lax
from jax.experimental import pallas as pl
from jax.experimental.pallas import tpu as pltpu


def _vmem_limit_bytes():
    """Per-generation VMEM budget: v7x has 64 MiB/TC, v5e/v6e have 128 MiB."""
    try:
        cap = pltpu.get_tpu_info().vmem_capacity_bytes
    except Exception:
        cap = 64 * 1024 * 1024
    if cap >= 128 * 1024 * 1024:
        return 100 * 1024 * 1024      # v5e / v6e: spend headroom on buffering
    return 56 * 1024 * 1024           # v7x: stay under the 64 MiB physical limit


# ----------------------- group metadata (cheap JAX glue, scalars only) -----------------------
def make_group_metadata(expert_ids, num_experts, num_tokens, tm):
    """Work list for the grouped expert GEMM over token tiles of size `tm`.

    One work unit = one (token-tile, expert) pair.  A tile straddling an expert
    boundary is visited once per expert with the other expert's rows masked off.
    Static length num_tiles + num_experts; padding units alias the last real
    unit's (tile, expert) — empty row range + first_visit forced to 0 — so they
    add no new DMAs and can never clobber output.
    """
    num_tiles = num_tokens // tm
    counts = jnp.bincount(expert_ids, length=num_experts)                 # [E]
    ends = jnp.cumsum(counts)                                             # [E]
    starts = ends - counts                                                # [E]
    first_tile = starts // tm                                             # [E]
    tiles_per_group = jnp.where(counts > 0, (ends - 1) // tm - first_tile + 1, 0)

    max_work = num_tiles + num_experts                                    # static upper bound
    work_cum = jnp.cumsum(tiles_per_group)                                # [E]
    total_work = work_cum[-1]

    w = jnp.arange(max_work, dtype=jnp.int32)
    is_pad = w >= total_work
    g = jnp.searchsorted(work_cum, w, side="right").astype(jnp.int32)
    g = jnp.minimum(g, num_experts - 1)
    pos = w - (work_cum[g] - tiles_per_group[g])

    # Padding units alias the last real unit's (tile, expert).
    last_group = jnp.max(
        jnp.where(counts > 0, jnp.arange(num_experts, dtype=jnp.int32), -1))
    last_group = jnp.maximum(last_group, 0).astype(jnp.int32)

    tile_ids = jnp.where(is_pad, num_tiles - 1, first_tile[g] + pos).astype(jnp.int32)
    group_ids = jnp.where(is_pad, last_group, g).astype(jnp.int32)

    # Valid rows of the tile (relative to tile start) belonging to this expert.
    row_lo = jnp.clip(starts[g] - tile_ids * tm, 0, tm)
    row_hi = jnp.clip(ends[g] - tile_ids * tm, 0, tm)
    row_lo = jnp.where(is_pad, tm, row_lo).astype(jnp.int32)              # empty for padding
    row_hi = jnp.where(is_pad, 0, row_hi).astype(jnp.int32)

    prev_tile = jnp.concatenate([jnp.full((1,), -1, jnp.int32), tile_ids[:-1]])
    first_visit = jnp.where(is_pad, 0, (tile_ids != prev_tile).astype(jnp.int32))
    first_visit = first_visit.astype(jnp.int32)
    return group_ids, tile_ids, row_lo, row_hi, first_visit


# ----------------------------- Kernel 1: grouped expert MLP -----------------------------
def _moe_grouped_mlp_kernel(gid_ref, tid_ref, lo_ref, hi_ref, fv_ref,
                            gate_ref, x_ref, w1_ref, w2_ref, o_ref, acc_ref):
    del gid_ref, tid_ref                       # consumed by the index_maps only
    w = pl.program_id(0)                       # work-unit (token tile x expert) axis
    f = pl.program_id(1)                       # ffn-hidden tile axis (reduction)
    nf = pl.num_programs(1)
    tm = x_ref.shape[0]

    # fc1 -> gelu -> fc2 partial for this F tile; bf16 MXU operands, f32 accumulate.
    x_bf = x_ref[...].astype(jnp.bfloat16)     # in-kernel cast: no extra HBM pass
    h = jnp.dot(x_bf, w1_ref[...], preferred_element_type=jnp.float32)      # (tm, tf)
    a = jax.nn.gelu(h).astype(jnp.bfloat16)                                  # (tm, tf)
    y = jnp.dot(a, w2_ref[...], preferred_element_type=jnp.float32)         # (tm, H)

    # Raw partials accumulate in an f32 VMEM scratch; mask + gate are applied once
    # at the end of the F reduction instead of on every f step.
    @pl.when(f == 0)
    def _():
        acc_ref[...] = y

    @pl.when(f != 0)
    def _():
        acc_ref[...] = acc_ref[...] + y

    @pl.when(f == nf - 1)
    def _():
        rows = lax.broadcasted_iota(jnp.int32, (tm, 1), 0)
        mask = jnp.logical_and(rows >= lo_ref[w], rows < hi_ref[w])          # (tm, 1)
        contrib = jnp.where(mask, gate_ref[...] * acc_ref[...], 0.0)
        contrib = contrib.astype(o_ref.dtype)                                # bf16 result
        is_first = fv_ref[w] == 1

        @pl.when(is_first)
        def _():
            o_ref[...] = contrib

        @pl.when(jnp.logical_not(is_first))
        def _():
            # Revisit of a boundary tile: row masks are disjoint, so adding the
            # bf16 contribution onto the resident block is exact.
            o_ref[...] = o_ref[...] + contrib


def moe_grouped_mlp(expert_ids, gate_weight, x, w1, w2, *, tm=256, tf=512):
    """Grouped expert MLP y = gate * (gelu(x @ w1[e]) @ w2[e]); tokens grouped by expert.

    Result is written in bfloat16; the F reduction stays in an f32 VMEM scratch.
    """
    T, H = x.shape
    E, _, F = w1.shape
    tm = min(tm, T)
    tf = min(tf, F)
    assert T % tm == 0 and tm % 8 == 0, (T, tm)
    assert F % tf == 0 and tf % 128 == 0, (F, tf)
    group_ids, tile_ids, row_lo, row_hi, first_visit = make_group_metadata(
        expert_ids, E, T, tm)
    max_work = int(group_ids.shape[0])
    nf = F // tf

    # Weights on the MXU in bf16 (real deployments already hold them in bf16);
    # activations stay f32 in HBM and are cast inside the kernel.
    w1_bf = w1.astype(jnp.bfloat16)
    w2_bf = w2.astype(jnp.bfloat16)

    cost = pl.CostEstimate(
        flops=4 * T * H * F,                               # two GEMMs
        transcendentals=T * F,                             # gelu
        bytes_accessed=(4 * T * H + 4 * T                  # x + gate (f32, once per tile)
                        + 2 * 2 * H * F * (T // tm + E)    # bf16 weights per work unit
                        + 2 * T * H),                      # bf16 result writeback
    )

    grid_spec = pltpu.PrefetchScalarGridSpec(
        num_scalar_prefetch=5,
        grid=(max_work, nf),
        in_specs=[
            pl.BlockSpec((tm, 1), lambda w, f, gid, tid, lo, hi, fv: (tid[w], 0)),      # gate
            pl.BlockSpec((tm, H), lambda w, f, gid, tid, lo, hi, fv: (tid[w], 0)),      # x tile
            # TODO(synk): pipeline_mode=pl.Buffered(3) on w1/w2 to spend spare v5e/v6e VMEM.
            pl.BlockSpec((None, H, tf), lambda w, f, gid, tid, lo, hi, fv: (gid[w], 0, f)),  # w1[e]
            pl.BlockSpec((None, tf, H), lambda w, f, gid, tid, lo, hi, fv: (gid[w], f, 0)),  # w2[e]
        ],
        out_specs=pl.BlockSpec((tm, H), lambda w, f, gid, tid, lo, hi, fv: (tid[w], 0)),
        scratch_shapes=[pltpu.VMEM((tm, H), jnp.float32)],   # f32 F-reduction accumulator
    )

    return pl.pallas_call(
        _moe_grouped_mlp_kernel,
        out_shape=jax.ShapeDtypeStruct((T, H), jnp.bfloat16),
        grid_spec=grid_spec,
        compiler_params=pltpu.CompilerParams(
            # Work axis revisits boundary output tiles and the F axis accumulates into
            # the scratch, so both must stay sequential.
            # TODO(synk): on v7x (2 TCs) add a leading "parallel" axis that splits the
            #             work list at an output-tile boundary to use both TensorCores.
            dimension_semantics=("arbitrary", "arbitrary"),
            vmem_limit_bytes=_vmem_limit_bytes(),
        ),
        cost_estimate=cost,
    )(group_ids, tile_ids, row_lo, row_hi, first_visit, gate_weight, x, w1_bf, w2_bf)


# --------------------- Kernel 2: fused un-permute gather + top-k combine ---------------------
def _combine_kernel(src_ref, result_ref, o_ref, buf, sems):
    # src_ref: [T] int32 in SMEM (scalar prefetch) -- inverse un-permute indices.
    # result_ref: (T, H) bf16 left in HBM (memory_space=pl.ANY); rows gathered via DMA.
    # o_ref: (tr, H) f32 output tile.
    # buf:   (2, topk*tr, H) double buffer (k-major rows).  sems: (2,) DMA semaphores.
    i = pl.program_id(0)
    n = pl.num_programs(0)
    _, rows, _ = buf.shape
    tr = o_ref.shape[0]
    topk = rows // tr

    def issue(tile, slot):
        base = tile * rows
        for t in range(tr):                     # static unroll
            for k in range(topk):
                src_row = src_ref[base + t * topk + k]
                pltpu.make_async_copy(
                    result_ref.at[pl.ds(src_row, 1), :],
                    buf.at[slot, pl.ds(k * tr + t, 1), :],   # k-major destination layout
                    sems.at[slot],
                ).start()

    @pl.when(i == 0)                            # prime slot 0 with tile 0's rows
    def _():
        issue(0, 0)

    @pl.when(i + 1 < n)                         # prefetch tile i+1 before waiting on tile i
    def _():
        issue(i + 1, (i + 1) % 2)

    slot = i % 2
    # Counted wait: all `rows` row copies of this slot signal sems[slot] (DMA
    # semaphores count bytes); a single wait sized to the whole slot consumes them.
    pltpu.make_async_copy(
        result_ref.at[pl.ds(0, rows), :], buf.at[slot], sems.at[slot]
    ).wait()

    acc = buf[slot, pl.ds(0, tr), :].astype(jnp.float32)
    for k in range(1, topk):
        acc = acc + buf[slot, pl.ds(k * tr, tr), :].astype(jnp.float32)
    o_ref[...] = acc


def unpermute_topk_combine(result, inv_index, *, topk, tr=64):
    """out[b] = sum_k result[inv_index[b*topk + k]]  (fused scatter-inverse + top-k sum)."""
    T, H = result.shape
    n0 = T // topk
    tr = min(tr, n0)
    assert n0 % tr == 0 and tr % 8 == 0, (n0, tr)
    rows = topk * tr
    grid_spec = pltpu.PrefetchScalarGridSpec(
        num_scalar_prefetch=1,
        grid=(n0 // tr,),
        in_specs=[pl.BlockSpec(memory_space=pl.ANY)],
        out_specs=pl.BlockSpec((tr, H), lambda i, src: (i, 0)),
        scratch_shapes=[
            pltpu.VMEM((2, rows, H), result.dtype),   # double-buffered row gather
            pltpu.SemaphoreType.DMA((2,)),            # one counted semaphore per slot
        ],
    )
    return pl.pallas_call(
        _combine_kernel,
        out_shape=jax.ShapeDtypeStruct((n0, H), jnp.float32),
        grid_spec=grid_spec,
        compiler_params=pltpu.CompilerParams(
            # Sequential: the double-buffered gather carries state across grid steps.
            dimension_semantics=("arbitrary",),
        ),
    )(inv_index, result)


# ----------------------------- Full forward -----------------------------
def moe_layer_forward(gate_weight, choosed_experts, inputs_shard, new_index, w1, w2,
                      *, topk, tm=256, tf=512, tr=64):
    T, _ = inputs_shard.shape
    # Expert computation (hot path, Pallas kernel 1).
    result = moe_grouped_mlp(choosed_experts[:, 0], gate_weight, inputs_shard, w1, w2,
                             tm=tm, tf=tf)
    # output1[new_index] = result  <=>  output1[q] = result[inv[q]]
    inv_index = jnp.zeros((T,), jnp.int32).at[new_index].set(jnp.arange(T, dtype=jnp.int32))
    # Fused un-permute + top-k reduction (Pallas kernel 2).
    output2 = unpermute_topk_combine(result, inv_index, topk=topk, tr=tr)
    # TODO(synk): torch.distributed.reduce_scatter_tensor over TP_GROUP would need
    #             pltpu.make_async_remote_copy; TP_GROUP.size() == 1 -> identity.
    mlp_bias = None
    return output2, mlp_bias


# ----------------------------- Reference (pure JAX, same bf16 math) -----------------------------
def reference_forward(gate_weight, choosed_experts, inputs_shard, new_index, w1, w2, topk):
    T, H = inputs_shard.shape
    e = choosed_experts[:, 0]
    xb = inputs_shard.astype(jnp.bfloat16)
    w1b = w1.astype(jnp.bfloat16)
    w2b = w2.astype(jnp.bfloat16)
    h = jnp.einsum("th,thf->tf", xb, w1b[e], preferred_element_type=jnp.float32)
    a = jax.nn.gelu(h).astype(jnp.bfloat16)
    y = jnp.einsum("tf,tfh->th", a, w2b[e], preferred_element_type=jnp.float32)
    result = (gate_weight * y).astype(jnp.bfloat16)          # kernel 1 writes bf16 result
    full = jnp.zeros((T, H), jnp.float32).at[new_index].set(result.astype(jnp.float32))
    return full.reshape(T // topk, topk, H).sum(axis=1)


if __name__ == "__main__":
    # Small TPU-tile-friendly shapes (the real module is 51200 x 5120 with many experts).
    N0 = 128       # original tokens on this shard
    TOPK = 2
    T = N0 * TOPK  # permuted / expanded tokens
    H = 128        # hidden size
    F = 1024       # ffn hidden size
    E = 4          # number of experts

    key = jax.random.PRNGKey(0)
    k_x, k_g, k_e, k_p, k_w1, k_w2 = jax.random.split(key, 6)

    inputs_shard = jax.random.normal(k_x, (T, H), dtype=jnp.float32)
    gate_weight = jax.random.uniform(k_g, (T, 1), dtype=jnp.float32, minval=0.1, maxval=1.0)
    # Megatron grouped-gemm permuted layout: rows grouped (sorted) by expert id.
    choosed_experts = jnp.sort(jax.random.randint(k_e, (T,), 0, E, dtype=jnp.int32))[:, None]
    new_index = jax.random.permutation(k_p, T).astype(jnp.int32)
    w1 = jax.random.normal(k_w1, (E, H, F), dtype=jnp.float32) / jnp.sqrt(H)
    w2 = jax.random.normal(k_w2, (E, F, H), dtype=jnp.float32) / jnp.sqrt(F)

    # Small tiles here only to exercise multi-tile / multi-f / multi-step paths;
    # production defaults are tm=256, tf=512, tr=64.
    out, mlp_bias = moe_layer_forward(
        gate_weight, choosed_experts, inputs_shard, new_index, w1, w2,
        topk=TOPK, tm=64, tf=512, tr=32,
    )
    out = jax.block_until_ready(out)

    ref = reference_forward(gate_weight, choosed_experts, inputs_shard, new_index, w1, w2, TOPK)
    assert out.shape == (N0, H), out.shape
    max_err = float(jnp.max(jnp.abs(out - ref)))
    # bf16 result path: agreement at bf16 rounding level.
    assert jnp.allclose(out, ref, atol=2e-2, rtol=2e-2), max_err

    print("KERNEL_OK")
</pallas_src>

<mosaic_0001>
module attributes {stable_mosaic.version = 11 : i64} {
  func.func @_moe_grouped_mlp_kernel(%arg0: i32, %arg1: i32, %arg2: memref<8xi32, #tpu.memory_space<smem>>, %arg3: memref<8xi32, #tpu.memory_space<smem>>, %arg4: memref<8xi32, #tpu.memory_space<smem>>, %arg5: memref<8xi32, #tpu.memory_space<smem>>, %arg6: memref<8xi32, #tpu.memory_space<smem>>, %arg7: memref<64x1xf32, #tpu.memory_space<vmem>>, %arg8: memref<64x128xf32, #tpu.memory_space<vmem>>, %arg9: memref<1x128x512xbf16, #tpu.memory_space<vmem>>, %arg10: memref<1x512x128xbf16, #tpu.memory_space<vmem>>, %arg11: memref<64x128xbf16, #tpu.memory_space<vmem>>, %arg12: memref<64x128xf32, #tpu.memory_space<vmem>>) attributes {dimension_semantics = [#tpu.dimension_semantics<arbitrary>, #tpu.dimension_semantics<arbitrary>], iteration_bounds = array<i64: 8, 2>, scalar_prefetch = 5 : i64, scratch_operands = 1 : i64, tpu.core_type = #tpu.core_type<tc>, window_params = [{transform_indices = @transform_0, window_bounds = array<i64: 64, 1>}, {transform_indices = @transform_1, window_bounds = array<i64: 64, 128>}, {transform_indices = @transform_2, window_bounds = array<i64: 1, 128, 512>}, {transform_indices = @transform_3, window_bounds = array<i64: 1, 512, 128>}, {transform_indices = @transform_4, window_bounds = array<i64: 64, 128>}]} {
    %c0 = arith.constant 0 : index
    %c0_0 = arith.constant 0 : index
    %0 = vector.load %arg8[%c0, %c0_0] : memref<64x128xf32, #tpu.memory_space<vmem>>, vector<64x128xf32>
    %1 = arith.truncf %0 : vector<64x128xf32> to vector<64x128xbf16>
    %c0_1 = arith.constant 0 : index
    %c0_2 = arith.constant 0 : index
    %c0_3 = arith.constant 0 : index
    %2 = vector.load %arg9[%c0_1, %c0_2, %c0_3] : memref<1x128x512xbf16, #tpu.memory_space<vmem>>, vector<1x128x512xbf16>
    %3 = vector.shape_cast %2 : vector<1x128x512xbf16> to vector<128x512xbf16>
    %cst = arith.constant dense<0.000000e+00> : vector<64x512xf32>
    %4 = tpu.matmul %1, %3, %cst {dimension_numbers = #tpu.dot_dimension_numbers<[1], [0], [0], [1], [0, 0, 1, 1], [], []>} : vector<64x128xbf16>, vector<128x512xbf16>, vector<64x512xf32> -> vector<64x512xf32>
    %5 = arith.mulf %4, %4 : vector<64x512xf32>
    %6 = arith.mulf %4, %5 : vector<64x512xf32>
    %cst_4 = arith.constant 4.471500e-02 : f32
    %7 = vector.broadcast %cst_4 : f32 to vector<64x512xf32>
    %8 = arith.mulf %7, %6 : vector<64x512xf32>
    %9 = arith.addf %4, %8 : vector<64x512xf32>
    %cst_5 = arith.constant 0.797884583 : f32
    %10 = vector.broadcast %cst_5 : f32 to vector<64x512xf32>
    %11 = arith.mulf %10, %9 : vector<64x512xf32>
    %12 = math.tanh %11 : vector<64x512xf32>
    %cst_6 = arith.constant 1.000000e+00 : f32
    %13 = vector.broadcast %cst_6 : f32 to vector<64x512xf32>
    %14 = arith.addf %13, %12 : vector<64x512xf32>
    %cst_7 = arith.constant 5.000000e-01 : f32
    %15 = vector.broadcast %cst_7 : f32 to vector<64x512xf32>
    %16 = arith.mulf %15, %14 : vector<64x512xf32>
    %17 = arith.mulf %4, %16 : vector<64x512xf32>
    %18 = arith.truncf %17 : vector<64x512xf32> to vector<64x512xbf16>
    %c0_8 = arith.constant 0 : index
    %c0_9 = arith.constant 0 : index
    %c0_10 = arith.constant 0 : index
    %19 = vector.load %arg10[%c0_8, %c0_9, %c0_10] : memref<1x512x128xbf16, #tpu.memory_space<vmem>>, vector<1x512x128xbf16>
    %20 = vector.shape_cast %19 : vector<1x512x128xbf16> to vector<512x128xbf16>
    %cst_11 = arith.constant dense<0.000000e+00> : vector<64x128xf32>
    %21 = tpu.matmul %18, %20, %cst_11 {dimension_numbers = #tpu.dot_dimension_numbers<[1], [0], [0], [1], [0, 0, 1, 1], [], []>} : vector<64x512xbf16>, vector<512x128xbf16>, vector<64x128xf32> -> vector<64x128xf32>
    %c0_i32 = arith.constant 0 : i32
    %22 = arith.cmpi eq, %arg1, %c0_i32 : i32
    %23 = arith.extui %22 : i1 to i32
    %c0_i32_12 = arith.constant 0 : i32
    %24 = arith.cmpi ne, %23, %c0_i32_12 : i32
    scf.if %24 {
      %c0_16 = arith.constant 0 : index
      %c0_17 = arith.constant 0 : index
      %31 = vector.load %arg12[%c0_16, %c0_17] : memref<64x128xf32, #tpu.memory_space<vmem>>, vector<64x128xf32>
      tpu.vector_store %arg12[%c0_16, %c0_17], %21 {strides = array<i32>} : memref<64x128xf32, #tpu.memory_space<vmem>>, vector<64x128xf32>,
    } else {
    }
    %c0_i32_13 = arith.constant 0 : i32
    %25 = arith.cmpi ne, %arg1, %c0_i32_13 : i32
    %26 = arith.extui %25 : i1 to i32
    %c0_i32_14 = arith.constant 0 : i32
    %27 = arith.cmpi ne, %26, %c0_i32_14 : i32
    scf.if %27 {
      %c0_16 = arith.constant 0 : index
      %c0_17 = arith.constant 0 : index
      %31 = vector.load %arg12[%c0_16, %c0_17] : memref<64x128xf32, #tpu.memory_space<vmem>>, vector<64x128xf32>
      %32 = arith.addf %31, %21 : vector<64x128xf32>
      %c0_18 = arith.constant 0 : index
      %c0_19 = arith.constant 0 : index
      %33 = vector.load %arg12[%c0_18, %c0_19] : memref<64x128xf32, #tpu.memory_space<vmem>>, vector<64x128xf32>
      tpu.vector_store %arg12[%c0_18, %c0_19], %32 {strides = array<i32>} : memref<64x128xf32, #tpu.memory_space<vmem>>, vector<64x128xf32>,
    } else {
    }
    %c1_i32 = arith.constant 1 : i32
    %28 = arith.cmpi eq, %arg1, %c1_i32 : i32
    %29 = arith.extui %28 : i1 to i32
    %c0_i32_15 = arith.constant 0 : i32
    %30 = arith.cmpi ne, %29, %c0_i32_15 : i32
    scf.if %30 {
      %31 = tpu.iota {dimensions = array<i32: 0>} : vector<64x1xi32>
      %32 = arith.index_cast %arg0 : i32 to index
      %33 = memref.load %arg4[%32] : memref<8xi32, #tpu.memory_space<smem>>
      %34 = vector.broadcast %33 : i32 to vector<64x1xi32>
      %35 = arith.cmpi sge, %31, %34 : vector<64x1xi32>
      %36 = arith.index_cast %arg0 : i32 to index
      %37 = memref.load %arg5[%36] : memref<8xi32, #tpu.memory_space<smem>>
      %38 = vector.broadcast %37 : i32 to vector<64x1xi32>
      %39 = arith.cmpi slt, %31, %38 : vector<64x1xi32>
      %40 = arith.andi %35, %39 : vector<64x1xi1>
      %c0_16 = arith.constant 0 : index
      %c0_17 = arith.constant 0 : index
      %41 = vector.load %arg7[%c0_16, %c0_17] : memref<64x1xf32, #tpu.memory_space<vmem>>, vector<64x1xf32>
      %c0_18 = arith.constant 0 : index
      %c0_19 = arith.constant 0 : index
      %42 = vector.load %arg12[%c0_18, %c0_19] : memref<64x128xf32, #tpu.memory_space<vmem>>, vector<64x128xf32>
      %43 = vector.broadcast %41 : vector<64x1xf32> to vector<64x128xf32>
      %44 = arith.mulf %43, %42 : vector<64x128xf32>
      %cst_20 = arith.constant 0.000000e+00 : f32
      %45 = vector.shape_cast %40 : vector<64x1xi1> to vector<64x1xi1>
      %46 = vector.broadcast %45 : vector<64x1xi1> to vector<64x128xi1>
      %47 = vector.broadcast %cst_20 : f32 to vector<64x128xf32>
      %48 = arith.select %46, %44, %47 : vector<64x128xi1>, vector<64x128xf32>
      %49 = arith.truncf %48 : vector<64x128xf32> to vector<64x128xbf16>
      %50 = arith.index_cast %arg0 : i32 to index
      %51 = memref.load %arg6[%50] : memref<8xi32, #tpu.memory_space<smem>>
      %c1_i32_21 = arith.constant 1 : i32
      %52 = arith.cmpi eq, %51, %c1_i32_21 : i32
      %53 = arith.extui %52 : i1 to i32
      %c0_i32_22 = arith.constant 0 : i32
      %54 = arith.cmpi ne, %53, %c0_i32_22 : i32
      scf.if %54 {
        %c0_24 = arith.constant 0 : index
        %c0_25 = arith.constant 0 : index
        %58 = vector.load %arg11[%c0_24, %c0_25] : memref<64x128xbf16, #tpu.memory_space<vmem>>, vector<64x128xbf16>
        tpu.vector_store %arg11[%c0_24, %c0_25], %49 {strides = array<i32>} : memref<64x128xbf16, #tpu.memory_space<vmem>>, vector<64x128xbf16>,
      } else {
      }
      %true = arith.constant true
      %55 = arith.xori %52, %true : i1
      %56 = arith.extui %55 : i1 to i32
      %c0_i32_23 = arith.constant 0 : i32
      %57 = arith.cmpi ne, %56, %c0_i32_23 : i32
      scf.if %57 {
        %c0_24 = arith.constant 0 : index
        %c0_25 = arith.constant 0 : index
        %58 = vector.load %arg11[%c0_24, %c0_25] : memref<64x128xbf16, #tpu.memory_space<vmem>>, vector<64x128xbf16>
        %59 = arith.addf %58, %49 : vector<64x128xbf16>
        %c0_26 = arith.constant 0 : index
        %c0_27 = arith.constant 0 : index
        %60 = vector.load %arg11[%c0_26, %c0_27] : memref<64x128xbf16, #tpu.memory_space<vmem>>, vector<64x128xbf16>
        tpu.vector_store %arg11[%c0_26, %c0_27], %59 {strides = array<i32>} : memref<64x128xbf16, #tpu.memory_space<vmem>>, vector<64x128xbf16>,
      } else {
      }
    } else {
    }
    return
  }
  func.func @transform_0(%arg0: i32, %arg1: i32, %arg2: memref<8xi32, #tpu.memory_space<smem>>, %arg3: memref<8xi32, #tpu.memory_space<smem>>, %arg4: memref<8xi32, #tpu.memory_space<smem>>, %arg5: memref<8xi32, #tpu.memory_space<smem>>, %arg6: memref<8xi32, #tpu.memory_space<smem>>) -> (i32, i32) {
    %0 = arith.index_cast %arg0 : i32 to index
    %1 = memref.load %arg3[%0] : memref<8xi32, #tpu.memory_space<smem>>
    %c0_i32 = arith.constant 0 : i32
    %c0_i32_0 = arith.constant 0 : i32
    return %1, %c0_i32 : i32, i32
  }
  func.func @transform_1(%arg0: i32, %arg1: i32, %arg2: memref<8xi32, #tpu.memory_space<smem>>, %arg3: memref<8xi32, #tpu.memory_space<smem>>, %arg4: memref<8xi32, #tpu.memory_space<smem>>, %arg5: memref<8xi32, #tpu.memory_space<smem>>, %arg6: memref<8xi32, #tpu.memory_space<smem>>) -> (i32, i32) {
    %0 = arith.index_cast %arg0 : i32 to index
    %1 = memref.load %arg3[%0] : memref<8xi32, #tpu.memory_space<smem>>
    %c0_i32 = arith.constant 0 : i32
    %c0_i32_0 = arith.constant 0 : i32
    return %1, %c0_i32 : i32, i32
  }
  func.func @transform_2(%arg0: i32, %arg1: i32, %arg2: memref<8xi32, #tpu.memory_space<smem>>, %arg3: memref<8xi32, #tpu.memory_space<smem>>, %arg4: memref<8xi32, #tpu.memory_space<smem>>, %arg5: memref<8xi32, #tpu.memory_space<smem>>, %arg6: memref<8xi32, #tpu.memory_space<smem>>) -> (i32, i32, i32) {
    %0 = arith.index_cast %arg0 : i32 to index
    %1 = memref.load %arg2[%0] : memref<8xi32, #tpu.memory_space<smem>>
    %c0_i32 = arith.constant 0 : i32
    %c0_i32_0 = arith.constant 0 : i32
    return %1, %c0_i32, %arg1 : i32, i32, i32
  }
  func.func @transform_3(%arg0: i32, %arg1: i32, %arg2: memref<8xi32, #tpu.memory_space<smem>>, %arg3: memref<8xi32, #tpu.memory_space<smem>>, %arg4: memref<8xi32, #tpu.memory_space<smem>>, %arg5: memref<8xi32, #tpu.memory_space<smem>>, %arg6: memref<8xi32, #tpu.memory_space<smem>>) -> (i32, i32, i32) {
    %0 = arith.index_cast %arg0 : i32 to index
    %1 = memref.load %arg2[%0] : memref<8xi32, #tpu.memory_space<smem>>
    %c0_i32 = arith.constant 0 : i32
    %c0_i32_0 = arith.constant 0 : i32
    return %1, %arg1, %c0_i32 : i32, i32, i32
  }
  func.func @transform_4(%arg0: i32, %arg1: i32, %arg2: memref<8xi32, #tpu.memory_space<smem>>, %arg3: memref<8xi32, #tpu.memory_space<smem>>, %arg4: memref<8xi32, #tpu.memory_space<smem>>, %arg5: memref<8xi32, #tpu.memory_space<smem>>, %arg6: memref<8xi32, #tpu.memory_space<smem>>) -> (i32, i32) {
    %0 = arith.index_cast %arg0 : i32 to index
    %1 = memref.load %arg3[%0] : memref<8xi32, #tpu.memory_space<smem>>
    %c0_i32 = arith.constant 0 : i32
    %c0_i32_0 = arith.constant 0 : i32
    return %1, %c0_i32 : i32, i32
  }
}

</mosaic_0001>

<llo_original>
// kernel: tpu_custom_call.1
$region0: #{tpu_custom_call.1}
  #allocation0 [shape = 'u32[]', space=smem, size = 0x4, offset = 0x4, fixed_abs, tag = 'smem constant byte address 0x4 - core index']
  #allocation1 [shape = 'u32[144,128]{1,0:T(1,128)}', space=vmem, size = 0x12000, scoped, tag = 'internal scratch']
  #allocation2 [shape = 'f32[64,128]{1,0:T(8,128)}', space=vmem, size = 0x8000, scoped, tag = 'scratch operand']
  #allocation3 [shape = 's32[1]{0}', space=sflag, size = 0x4, scoped, tag = 'scoped memory for tpu_custom_call.1']
  #allocation4 [shape = 'u8[512]{0}', space=smem, size = 0x200, scoped, tag = 'prefetched SMEM operand 0']
  #allocation5 [shape = 'u8[512]{0}', space=smem, size = 0x200, scoped, tag = 'prefetched SMEM operand 1']
  #allocation6 [shape = 'u8[512]{0}', space=smem, size = 0x200, scoped, tag = 'prefetched SMEM operand 2']
  #allocation7 [shape = 'u8[512]{0}', space=smem, size = 0x200, scoped, tag = 'prefetched SMEM operand 3']
  #allocation8 [shape = 'u8[512]{0}', space=smem, size = 0x200, scoped, tag = 'prefetched SMEM operand 4']
  %s0 = inlined_call_operand.vmem [shape: s32[8], index: 0, kind: input, shape index: {}]
  %s1 = inlined_call_operand.vmem [shape: s32[8], index: 1, kind: input, shape index: {}]
  %s2 = inlined_call_operand.vmem [shape: s32[8], index: 2, kind: input, shape index: {}]
  %s3 = inlined_call_operand.vmem [shape: s32[8], index: 3, kind: input, shape index: {}]
  %s4 = inlined_call_operand.vmem [shape: s32[8], index: 4, kind: input, shape index: {}]
  %s5 = inlined_call_operand.vmem [shape: f32[256,1], index: 5, kind: input, shape index: {}]
  %s6 = inlined_call_operand.vmem [shape: f32[256,128], index: 6, kind: input, shape index: {}]
  %s7 = inlined_call_operand.hbm [shape: bf16[4,128,1024], index: 7, kind: input, shape index: {}]
  %s8 = inlined_call_operand.hbm [shape: bf16[4,1024,128], index: 8, kind: input, shape index: {}]
  %s9 = inlined_call_operand.hbm [shape: bf16[256,128], index: 9, kind: output, shape index: {}]
  %s10 = sld [smem:[#allocation0]]
  $region77: #{tpu_custom_call.1} parent=0
    _
  %s12 = ssub.s32 1, %s10
  %s13 = scalar_select 0, %s12, %s10
  %s14 = sshll.u32 %s0, 4
  %s15 = int_to_ptr.vmem [resolvable:$true] %s14
  %17 = dma.vmem_to_smem %s15, 16, [#allocation4], [#allocation3]
  %s18 = sshll.u32 %s1, 4
  %s19 = int_to_ptr.vmem [resolvable:$true] %s18
  %21 = dma.vmem_to_smem %s19, 16, [#allocation5], [#allocation3]
  %s22 = sshll.u32 %s2, 4
  %s23 = int_to_ptr.vmem [resolvable:$true] %s22
  %25 = dma.vmem_to_smem %s23, 16, [#allocation6], [#allocation3]
  %s26 = sshll.u32 %s3, 4
  %s27 = int_to_ptr.vmem [resolvable:$true] %s26
  %29 = dma.vmem_to_smem %s27, 16, [#allocation7], [#allocation3]
  %s30 = sshll.u32 %s4, 4
  %s31 = int_to_ptr.vmem [resolvable:$true] %s30
  %33 = dma.vmem_to_smem %s31, 16, [#allocation8], [#allocation3]
  %34 = dma.done [#allocation3], 80
  %35 = sfence
  $region1: #{tpu_custom_call.1} parent=0
    #allocation9 [shape = 'u8[262144]{0}', space=vmem, size = 0x40000, scoped, tag = 'input window, operand 7']
    #allocation10 [shape = 's32[2]{0}', space=sflag, size = 0x8, scoped, tag = 'scoped memory for tpu_custom_call.1']
    #allocation11 [shape = 's32[2]{0}', space=sflag, size = 0x8, scoped, tag = 'scoped memory for tpu_custom_call.1']
    #allocation12 [shape = 'u8[262144]{0}', space=vmem, size = 0x40000, scoped, tag = 'input window, operand 8']
    #allocation13 [shape = 's32[2]{0}', space=sflag, size = 0x8, scoped, tag = 'scoped memory for tpu_custom_call.1']
    #allocation14 [shape = 'u8[32768]{0}', space=vmem, size = 0x8000, scoped, tag = 'output window, operand 0']
    %36 = vsyncpa [#allocation10], 0
    %s37 = scalar_lea.sflag [#allocation10], 1
    %38 = vsyncpa %s37, 0
    %39 = vsyncpa [#allocation13], 0
    %s40 = scalar_lea.sflag [#allocation13], 1
    %41 = vsyncpa %s40, 0
    %42 = vsyncpa [#allocation11], 0
    %s43 = scalar_lea.sflag [#allocation11], 1
    %44 = vsyncpa %s43, 0
    loop: start=0, step=1, limit=18
    $region2: #{tpu_custom_call.1} parent=1 // loop_pre_header
      _
    $region3: #{tpu_custom_call.1} parent=1 // loop_header
      %s46 = sphi 0, %s50
      %p47 = scmp.ge.s32.totalorder %s46, 18
      %s53 = sphi 0, %s65
      %s54 = sphi 0, %s61
      %s55 = sphi 0, %s53
      %s56 = sphi 0, %s54
      %s57 = sphi 0, %s55
      %s58 = sphi 0, %s56
      %s70 = sphi 0, %s72
      %s73 = sphi 0, %s70
      %s74 = sphi 0, %s73
      %s90 = sphi 0, %s74
      %s98 = sphi 0, %s100
      %s101 = sphi 0, %s98
      %s102 = sphi 0, %s101
      %s118 = sphi 0, %s102
      %s128 = sphi 0, %s130
      %s131 = sphi 0, %s128
      %s132 = sphi 0, %s131
      %s148 = sphi 0, %s132
      %s158 = sphi 0, %s160
      %s161 = sphi 0, %s158
      %s162 = sphi 0, %s161
      %s178 = sphi 0, %s162
      %s186 = sphi 0, %s188
      %s189 = sphi 0, %s186
      %s190 = sphi 0, %s189
      %s206 = sphi 0, %s190
    $region4: #{tpu_custom_call.1} parent=1 // loop_header_branch
      %49 = sbr.rel (%p47) target = $region8
    $region5: #{tpu_custom_call.1} parent=1 // loop_body
      %s51 = ssub.s32 %s46, 1
      %s52 = ssub.s32 %s46, 2
      %s59 = sadd.s32 1, %s54
      %p60 = scmp.ge.s32.totalorder %s59, 2
      %s61 = scalar_select %p60, 0, %s59
      %s62 = sadd.s32 1, %s53
      %s63 = scalar_select %p60, %s62, %s53
      %p64 = scmp.ge.s32.totalorder %s63, 8
      %s65 = scalar_select %p64, 0, %s63
      %s66 = sld [smem:[#allocation5 + %s53]]
      %s67 = sld [smem:[#allocation5 + %s65]]
      %s68 = ssub.s32 %s66, %s67
      %p69 = scmp.eq.s32.totalorder %s68, 0
      %s71 = sadd.s32 %s70, 1
      %s72 = scalar_select %p69, %s70, %s71
      %p75 = pneg %p69
      %p76 = scmp.eq.s32.totalorder %s46, 15
      %p77 = por %p75, %p76
      %p78 = scmp.ne.s32.totalorder %s70, %s73
      %p79 = scmp.eq.s32.totalorder %s46, 0
      %p80 = por %p78, %p79
      %p81 = scmp.ne.s32.totalorder %s70, %s73
      %p82 = scmp.eq.s32.totalorder %s51, 15
      %p83 = por %p81, %p82
      %p84 = scmp.ne.s32.totalorder %s73, %s74
      %p85 = scmp.eq.s32.totalorder %s51, 0
      %p86 = por %p84, %p85
      %p87 = scmp.ne.s32.totalorder %s73, %s74
      %p88 = scmp.eq.s32.totalorder %s52, 15
      %p89 = por %p87, %p88
      %p91 = scmp.ne.s32.totalorder %s74, %s90
      %p92 = scmp.eq.s32.totalorder %s52, 0
      %p93 = por %p91, %p92
      %s94 = sld [smem:[#allocation5 + %s53]]
      %s95 = sld [smem:[#allocation5 + %s65]]
      %s96 = ssub.s32 %s94, %s95
      %p97 = scmp.eq.s32.totalorder %s96, 0
      %s99 = sadd.s32 %s98, 1
      %s100 = scalar_select %p97, %s98, %s99
      %p103 = pneg %p97
      %p104 = scmp.eq.s32.totalorder %s46, 15
      %p105 = por %p103, %p104
      %p106 = scmp.ne.s32.totalorder %s98, %s101
      %p107 = scmp.eq.s32.totalorder %s46, 0
      %p108 = por %p106, %p107
      %p109 = scmp.ne.s32.totalorder %s98, %s101
      %p110 = scmp.eq.s32.totalorder %s51, 15
      %p111 = por %p109, %p110
      %p112 = scmp.ne.s32.totalorder %s101, %s102
      %p113 = scmp.eq.s32.totalorder %s51, 0
      %p114 = por %p112, %p113
      %p115 = scmp.ne.s32.totalorder %s101, %s102
      %p116 = scmp.eq.s32.totalorder %s52, 15
      %p117 = por %p115, %p116
      %p119 = scmp.ne.s32.totalorder %s102, %s118
      %p120 = scmp.eq.s32.totalorder %s52, 0
      %p121 = por %p119, %p120
      %s122 = sld [smem:[#allocation4 + %s53]]
      %s123 = sld [smem:[#allocation4 + %s65]]
      %s124 = ssub.s32 %s122, %s123
      %s125 = ssub.s32 %s54, %s61
      %s126 = sor.u32 %s124, %s125
      %p127 = scmp.eq.s32.totalorder %s126, 0
      %s129 = sadd.s32 %s128, 1
      %s130 = scalar_select %p127, %s128, %s129
      %p133 = pneg %p127
      %p134 = scmp.eq.s32.totalorder %s46, 15
      %p135 = por %p133, %p134
      %p136 = scmp.ne.s32.totalorder %s128, %s131
      %p137 = scmp.eq.s32.totalorder %s46, 0
      %p138 = por %p136, %p137
      %p139 = scmp.ne.s32.totalorder %s128, %s131
      %p140 = scmp.eq.s32.totalorder %s51, 15
      %p141 = por %p139, %p140
      %p142 = scmp.ne.s32.totalorder %s131, %s132
      %p143 = scmp.eq.s32.totalorder %s51, 0
      %p144 = por %p142, %p143
      %p145 = scmp.ne.s32.totalorder %s131, %s132
      %p146 = scmp.eq.s32.totalorder %s52, 15
      %p147 = por %p145, %p146
      %p149 = scmp.ne.s32.totalorder %s132, %s148
      %p150 = scmp.eq.s32.totalorder %s52, 0
      %p151 = por %p149, %p150
      %s152 = sld [smem:[#allocation4 + %s53]]
      %s153 = sld [smem:[#allocation4 + %s65]]
      %s154 = ssub.s32 %s152, %s153
      %s155 = ssub.s32 %s54, %s61
      %s156 = sor.u32 %s154, %s155
      %p157 = scmp.eq.s32.totalorder %s156, 0
      %s159 = sadd.s32 %s158, 1
      %s160 = scalar_select %p157, %s158, %s159
      %p163 = pneg %p157
      %p164 = scmp.eq.s32.totalorder %s46, 15
      %p165 = por %p163, %p164
      %p166 = scmp.ne.s32.totalorder %s158, %s161
      %p167 = scmp.eq.s32.totalorder %s46, 0
      %p168 = por %p166, %p167
      %p169 = scmp.ne.s32.totalorder %s158, %s161
      %p170 = scmp.eq.s32.totalorder %s51, 15
      %p171 = por %p169, %p170
      %p172 = scmp.ne.s32.totalorder %s161, %s162
      %p173 = scmp.eq.s32.totalorder %s51, 0
      %p174 = por %p172, %p173
      %p175 = scmp.ne.s32.totalorder %s161, %s162
      %p176 = scmp.eq.s32.totalorder %s52, 15
      %p177 = por %p175, %p176
      %p179 = scmp.ne.s32.totalorder %s162, %s178
      %p180 = scmp.eq.s32.totalorder %s52, 0
      %p181 = por %p179, %p180
      %s182 = sld [smem:[#allocation5 + %s53]]
      %s183 = sld [smem:[#allocation5 + %s65]]
      %s184 = ssub.s32 %s182, %s183
      %p185 = scmp.eq.s32.totalorder %s184, 0
      %s187 = sadd.s32 %s186, 1
      %s188 = scalar_select %p185, %s186, %s187
      %p191 = pneg %p185
      %p192 = scmp.eq.s32.totalorder %s46, 15
      %p193 = por %p191, %p192
      %p194 = scmp.ne.s32.totalorder %s186, %s189
      %p195 = scmp.eq.s32.totalorder %s46, 0
      %p196 = por %p194, %p195
      %p197 = scmp.ne.s32.totalorder %s186, %s189
      %p198 = scmp.eq.s32.totalorder %s51, 15
      %p199 = por %p197, %p198
      %p200 = scmp.ne.s32.totalorder %s189, %s190
      %p201 = scmp.eq.s32.totalorder %s51, 0
      %p202 = por %p200, %p201
      %p203 = scmp.ne.s32.totalorder %s189, %s190
      %p204 = scmp.eq.s32.totalorder %s52, 15
      %p205 = por %p203, %p204
      %p207 = scmp.ne.s32.totalorder %s190, %s206
      %p208 = scmp.eq.s32.totalorder %s52, 0
      %p209 = por %p207, %p208
      %p210 = scmp.le.s32.totalorder 1, %s46
      %p211 = scmp.lt.s32.totalorder %s46, 17
      %p212 = pnand %p210, %p211
      %p213 = pneg %p212
      // Predicated region
      $region9: #{tpu_custom_call.1} parent=5 // pred_check
        _
      $region10: #{tpu_custom_call.1} parent=5 // pred_check_branch
        %215 = sbr.rel (%p212) target = $region12
      $region11: #{tpu_custom_call.1} parent=5 // pred_region
        %s216 = ssub.s32 %s46, 1
      $region12: #{tpu_custom_call.1} parent=5 // pred_fallthru
        _
      %p217 = scmp.lt.s32.totalorder %s46, 16
      // Predicated region
      $region13: #{tpu_custom_call.1} parent=5 // pred_check
        %p218 = pneg %p217
      $region14: #{tpu_custom_call.1} parent=5 // pred_check_branch
        %220 = sbr.rel (%p218) target = $region16
      $region15: #{tpu_custom_call.1} parent=5 // pred_region
        // Predicated region
        $region17: #{tpu_custom_call.1} parent=15 // pred_check
          %p221 = pneg %p80
        $region18: #{tpu_custom_call.1} parent=15 // pred_check_branch
          %223 = sbr.rel (%p221) target = $region20
        $region19: #{tpu_custom_call.1} parent=15 // pred_region
          %s224 = sld [smem:[#allocation5 + %s53]]
          %s225 = smul.u32 8, %s224
          %p226 = scmp.lt.s32.totalorder %s225, 31
          %s227 = scalar_select %p226, %s225, 31
          %s228 = smul.addr %s227, 8
          %s229 = scalar_lea.vmem %s5, %s228
          %s230 = sld [smem:[#allocation5 + %s53]]
          %s231 = smul.u32 8, %s230
        $region20: #{tpu_custom_call.1} parent=15 // pred_fallthru
          _
        // Predicated region
        $region21: #{tpu_custom_call.1} parent=15 // pred_check
          %p232 = pneg %p108
        $region22: #{tpu_custom_call.1} parent=15 // pred_check_branch
          %234 = sbr.rel (%p232) target = $region24
        $region23: #{tpu_custom_call.1} parent=15 // pred_region
          %s235 = sld [smem:[#allocation5 + %s53]]
          %s236 = smul.u32 8, %s235
          %p237 = scmp.lt.s32.totalorder %s236, 31
          %s238 = scalar_select %p237, %s236, 31
          %s239 = smul.addr %s238, 8
          %s240 = scalar_lea.vmem %s6, %s239
          %s241 = sld [smem:[#allocation5 + %s53]]
          %s242 = smul.u32 8, %s241
        $region24: #{tpu_custom_call.1} parent=15 // pred_fallthru
          _
        // Predicated region
        $region25: #{tpu_custom_call.1} parent=15 // pred_check
          %p243 = pneg %p138
        $region26: #{tpu_custom_call.1} parent=15 // pred_check_branch
          %245 = sbr.rel (%p243) target = $region28
        $region27: #{tpu_custom_call.1} parent=15 // pred_region
          %s246 = sand.u32 %s128, 1
          %s247 = scalar_lea.sflag [#allocation10], %s246
          %s248 = sand.u32 %s128, 1
          %s249 = smul.addr %s248, 256
          %s250 = scalar_lea.vmem [#allocation9], %s249
          %s251 = sld [smem:[#allocation4 + %s53]]
          %s252 = smul.u32 4, %s54
          %s254 = ssub.s32 4096, 4096
          %255 = vsyncadd %s247, %s254
          %s256 = smul.addr %s251, 128
          %s257 = sadd.s32 %s252, %s256
          %s258 = smul.addr %s257, 64
          %s259 = scalar_lea.hbm %s7, %s258
          %s260 = sshll.u32 %s250, 4
          %s261 = int_to_ptr.vmem [resolvable:$true] %s260
          %266 = dma.hbm_to_vmem [thread:$0]  %s259, 4096, %s261, %s247, 512, 256, 16
        $region28: #{tpu_custom_call.1} parent=15 // pred_fallthru
          _
        // Predicated region
        $region29: #{tpu_custom_call.1} parent=15 // pred_check
          %p267 = pneg %p168
        $region30: #{tpu_custom_call.1} parent=15 // pred_check_branch
          %269 = sbr.rel (%p267) target = $region32
        $region31: #{tpu_custom_call.1} parent=15 // pred_region
          %s270 = sand.u32 %s158, 1
          %s271 = scalar_lea.sflag [#allocation13], %s270
          %s272 = sand.u32 %s158, 1
          %s273 = smul.addr %s272, 256
          %s274 = scalar_lea.vmem [#allocation12], %s273
          %s275 = sld [smem:[#allocation4 + %s53]]
          %s276 = smul.u32 64, %s54
          %s278 = ssub.s32 4096, 4096
          %279 = vsyncadd %s271, %s278
          %s280 = smul.addr %s275, 128
          %s281 = sadd.s32 %s276, %s280
          %s282 = smul.addr %s281, 64
          %s283 = scalar_lea.hbm %s8, %s282
          %s284 = sshll.u32 %s274, 4
          %s285 = int_to_ptr.vmem [resolvable:$true] %s284
          %290 = dma.hbm_to_vmem [thread:$0]  %s283, 4096, %s285, %s271, 64, 64, 4
        $region32: #{tpu_custom_call.1} parent=15 // pred_fallthru
          _
      $region16: #{tpu_custom_call.1} parent=5 // pred_fallthru
        _
      %p291 = scmp.le.s32.totalorder 1, %s46
      %p292 = scmp.lt.s32.totalorder %s46, 17
      %p293 = pnand %p291, %p292
      %p294 = pneg %p293
      // Predicated region
      $region33: #{tpu_custom_call.1} parent=5 // pred_check
        _
      $region34: #{tpu_custom_call.1} parent=5 // pred_check_branch
        %296 = sbr.rel (%p293) target = $region36
      $region35: #{tpu_custom_call.1} parent=5 // pred_region
        %s297 = ssub.s32 %s46, 1
        %s298 = sand.u32 %s131, 1
        %s299 = scalar_lea.sflag [#allocation10], %s298
        %s300 = sand.u32 %s131, 1
        %s301 = smul.addr %s300, 256
        %s302 = scalar_lea.vmem [#allocation9], %s301
        // Predicated region
        $region37: #{tpu_custom_call.1} parent=35 // pred_check
          %p303 = pneg %p144
        $region38: #{tpu_custom_call.1} parent=35 // pred_check_branch
          %305 = sbr.rel (%p303) target = $region40
        $region39: #{tpu_custom_call.1} parent=35 // pred_region
          %306 = dma.done %s299, 4096
        $region40: #{tpu_custom_call.1} parent=35 // pred_fallthru
          _
        %s307 = sand.u32 %s161, 1
        %s308 = scalar_lea.sflag [#allocation13], %s307
        %s309 = sand.u32 %s161, 1
        %s310 = smul.addr %s309, 256
        %s311 = scalar_lea.vmem [#allocation12], %s310
        // Predicated region
        $region41: #{tpu_custom_call.1} parent=35 // pred_check
          %p312 = pneg %p174
        $region42: #{tpu_custom_call.1} parent=35 // pred_check_branch
          %314 = sbr.rel (%p312) target = $region44
        $region43: #{tpu_custom_call.1} parent=35 // pred_region
          %315 = dma.done %s308, 4096
        $region44: #{tpu_custom_call.1} parent=35 // pred_fallthru
          _
        %s316 = sld [smem:[#allocation5 + %s55]]
        %s317 = smul.u32 8, %s316
        %p318 = scmp.lt.s32.totalorder %s317, 31
        %s319 = scalar_select %p318, %s317, 31
        %s320 = smul.addr %s319, 8
        %s321 = scalar_lea.vmem %s5, %s320
        %p322 = pneg %p86
        %p323 = pneg %p83
        %s324 = sld [smem:[#allocation5 + %s55]]
        %s325 = smul.u32 8, %s324
        %p326 = scmp.lt.s32.totalorder %s325, 31
        %s327 = scalar_select %p326, %s325, 31
        %s328 = smul.addr %s327, 8
        %s329 = scalar_lea.vmem %s6, %s328
        %p330 = pneg %p114
        %p331 = pneg %p111
        %s332 = sand.u32 %s131, 1
        %s333 = scalar_lea.sflag [#allocation10], %s332
        %s334 = sand.u32 %s131, 1
        %s335 = smul.addr %s334, 256
        %s336 = scalar_lea.vmem [#allocation9], %s335
        %p337 = pneg %p144
        %p338 = pneg %p141
        %s339 = sand.u32 %s161, 1
        %s340 = scalar_lea.sflag [#allocation13], %s339
        %s341 = sand.u32 %s161, 1
        %s342 = smul.addr %s341, 256
        %s343 = scalar_lea.vmem [#allocation12], %s342
        %p344 = pneg %p174
        %p345 = pneg %p171
        %p346 = pneg %p202
        %p347 = pneg %p199
        %s348 = sand.u32 %s189, 1
        %s349 = scalar_lea.sflag [#allocation11], %s348
        %s350 = sand.u32 %s189, 1
        %s351 = smul.addr %s350, 32
        %s352 = scalar_lea.vmem [#allocation14], %s351
        %s353 = sld [smem:[#allocation5 + %s55]]
        %s354 = smul.u32 8, %s353
        %p355 = scmp.lt.s32.totalorder %s354, 31
        %s356 = scalar_select %p355, %s354, 31
        %s357 = smul.addr %s356, 8
        %s358 = scalar_lea.vmem %s5, %s357
        %s359 = sld [smem:[#allocation5 + %s55]]
        %s360 = smul.u32 8, %s359
        %s361 = sld [smem:[#allocation5 + %s55]]
        %s362 = smul.u32 8, %s361
        %p363 = scmp.lt.s32.totalorder %s362, 31
        %s364 = scalar_select %p363, %s362, 31
        %s365 = smul.addr %s364, 8
        %s366 = scalar_lea.vmem %s6, %s365
        %s367 = sld [smem:[#allocation5 + %s55]]
        %s368 = smul.u32 8, %s367
        %s369 = sld [smem:[#allocation4 + %s55]]
        %s370 = smul.u32 4, %s56
        %s371 = sld [smem:[#allocation4 + %s55]]
        %s372 = smul.u32 64, %s56
        %s373 = sld [smem:[#allocation5 + %s55]]
        %s374 = smul.u32 8, %s373
        %v376 = vld [vmem:[%s366] sm:$0xff]
        %v377 = vld [vmem:[%s366 + $0x8] sm:$0xff]
        %v378 = vld [vmem:[%s366 + $0x10] sm:$0xff]
        %v379 = vld [vmem:[%s366 + $0x18] sm:$0xff]
        %v380 = vld [vmem:[%s366 + $0x20] sm:$0xff]
        %v381 = vld [vmem:[%s366 + $0x28] sm:$0xff]
        %v382 = vld [vmem:[%s366 + $0x30] sm:$0xff]
        %v383 = vld [vmem:[%s366 + $0x38] sm:$0xff]
        %v384 = vpack.c.bf16 %v377, %v376
        %v385 = vpack.c.bf16 %v379, %v378
        %v386 = vpack.c.bf16 %v381, %v380
        %v387 = vpack.c.bf16 %v383, %v382
        %v388 = vld [vmem:[%s302] sm:$0xff]
        %v389 = vld [vmem:[%s302 + $0x8] sm:$0xff]
        %v390 = vld [vmem:[%s302 + $0x10] sm:$0xff]
        %v391 = vld [vmem:[%s302 + $0x18] sm:$0xff]
        %v392 = vld [vmem:[%s302 + $0x20] sm:$0xff]
        %v393 = vld [vmem:[%s302 + $0x28] sm:$0xff]
        %v394 = vld [vmem:[%s302 + $0x30] sm:$0xff]
        %v395 = vld [vmem:[%s302 + $0x38] sm:$0xff]
        %v396 = vld [vmem:[%s302 + $0x40] sm:$0xff]
        %v397 = vld [vmem:[%s302 + $0x48] sm:$0xff]
        %v398 = vld [vmem:[%s302 + $0x50] sm:$0xff]
        %v399 = vld [vmem:[%s302 + $0x58] sm:$0xff]
        %v400 = vld [vmem:[%s302 + $0x60] sm:$0xff]
        %v401 = vld [vmem:[%s302 + $0x68] sm:$0xff]
        %v402 = vld [vmem:[%s302 + $0x70] sm:$0xff]
        %v403 = vld [vmem:[%s302 + $0x78] sm:$0xff]
        %v404 = vld [vmem:[%s302 + $0x80] sm:$0xff]
        %v405 = vld [vmem:[%s302 + $0x88] sm:$0xff]
        %v406 = vld [vmem:[%s302 + $0x90] sm:$0xff]
        %v407 = vld [vmem:[%s302 + $0x98] sm:$0xff]
        %v408 = vld [vmem:[%s302 + $0xa0] sm:$0xff]
        %v409 = vld [vmem:[%s302 + $0xa8] sm:$0xff]
        %v410 = vld [vmem:[%s302 + $0xb0] sm:$0xff]
        %v411 = vld [vmem:[%s302 + $0xb8] sm:$0xff]
        %v412 = vld [vmem:[%s302 + $0xc0] sm:$0xff]
        %v413 = vld [vmem:[%s302 + $0xc8] sm:$0xff]
        %v414 = vld [vmem:[%s302 + $0xd0] sm:$0xff]
        %v415 = vld [vmem:[%s302 + $0xd8] sm:$0xff]
        %v416 = vld [vmem:[%s302 + $0xe0] sm:$0xff]
        %v417 = vld [vmem:[%s302 + $0xe8] sm:$0xff]
        %v418 = vld [vmem:[%s302 + $0xf0] sm:$0xff]
        %v419 = vld [vmem:[%s302 + $0xf8] sm:$0xff]
        %v452 = vunpack.c.l.b16 %v388
        %v453 = vunpack.c.h.b16 %v388
        %v454 = vunpack.c.l.b16 %v389
        %v455 = vunpack.c.h.b16 %v389
        %v456 = vunpack.c.l.b16 %v390
        %v457 = vunpack.c.h.b16 %v390
        %v458 = vunpack.c.l.b16 %v391
        %v459 = vunpack.c.h.b16 %v391
        %v460 = vunpack.c.l.b16 %v392
        %v461 = vunpack.c.h.b16 %v392
        %v462 = vunpack.c.l.b16 %v393
        %v463 = vunpack.c.h.b16 %v393
        %v464 = vunpack.c.l.b16 %v394
        %v465 = vunpack.c.h.b16 %v394
        %v466 = vunpack.c.l.b16 %v395
        %v467 = vunpack.c.h.b16 %v395
        %v468 = vunpack.c.l.b16 %v396
        %v469 = vunpack.c.h.b16 %v396
        %v470 = vunpack.c.l.b16 %v397
        %v471 = vunpack.c.h.b16 %v397
        %v472 = vunpack.c.l.b16 %v398
        %v473 = vunpack.c.h.b16 %v398
        %v474 = vunpack.c.l.b16 %v399
        %v475 = vunpack.c.h.b16 %v399
        %v476 = vunpack.c.l.b16 %v400
        %v477 = vunpack.c.h.b16 %v400
        %v478 = vunpack.c.l.b16 %v401
        %v479 = vunpack.c.h.b16 %v401
        %v480 = vunpack.c.l.b16 %v402
        %v481 = vunpack.c.h.b16 %v402
        %v482 = vunpack.c.l.b16 %v403
        %v483 = vunpack.c.h.b16 %v403
        %v484 = vunpack.c.l.b16 %v404
        %v485 = vunpack.c.h.b16 %v404
        %v486 = vunpack.c.l.b16 %v405
        %v487 = vunpack.c.h.b16 %v405
        %v488 = vunpack.c.l.b16 %v406
        %v489 = vunpack.c.h.b16 %v406
        %v490 = vunpack.c.l.b16 %v407
        %v491 = vunpack.c.h.b16 %v407
        %v492 = vunpack.c.l.b16 %v408
        %v493 = vunpack.c.h.b16 %v408
        %v494 = vunpack.c.l.b16 %v409
        %v495 = vunpack.c.h.b16 %v409
        %v496 = vunpack.c.l.b16 %v410
        %v497 = vunpack.c.h.b16 %v410
        %v498 = vunpack.c.l.b16 %v411
        %v499 = vunpack.c.h.b16 %v411
        %v500 = vunpack.c.l.b16 %v412
        %v501 = vunpack.c.h.b16 %v412
        %v502 = vunpack.c.l.b16 %v413
        %v503 = vunpack.c.h.b16 %v413
        %v504 = vunpack.c.l.b16 %v414
        %v505 = vunpack.c.h.b16 %v414
        %v506 = vunpack.c.l.b16 %v415
        %v507 = vunpack.c.h.b16 %v415
        %v508 = vunpack.c.l.b16 %v416
        %v509 = vunpack.c.h.b16 %v416
        %v510 = vunpack.c.l.b16 %v417
        %v511 = vunpack.c.h.b16 %v417
        %v512 = vunpack.c.l.b16 %v418
        %v513 = vunpack.c.h.b16 %v418
        %v514 = vunpack.c.l.b16 %v419
        %v515 = vunpack.c.h.b16 %v419
        %v516 = vpack.c.b16 %v456, %v452
        %v517 = vpack.c.b16 %v457, %v453
        %v518 = vpack.c.b16 %v458, %v454
        %v519 = vpack.c.b16 %v459, %v455
        %v520 = vpack.c.b16 %v464, %v460
        %v521 = vpack.c.b16 %v465, %v461
        %v522 = vpack.c.b16 %v466, %v462
        %v523 = vpack.c.b16 %v467, %v463
        %v524 = vpack.c.b16 %v472, %v468
        %v525 = vpack.c.b16 %v473, %v469
        %v526 = vpack.c.b16 %v474, %v470
        %v527 = vpack.c.b16 %v475, %v471
        %v528 = vpack.c.b16 %v480, %v476
        %v529 = vpack.c.b16 %v481, %v477
        %v530 = vpack.c.b16 %v482, %v478
        %v531 = vpack.c.b16 %v483, %v479
        %v532 = vpack.c.b16 %v488, %v484
        %v533 = vpack.c.b16 %v489, %v485
        %v534 = vpack.c.b16 %v490, %v486
        %v535 = vpack.c.b16 %v491, %v487
        %v536 = vpack.c.b16 %v496, %v492
        %v537 = vpack.c.b16 %v497, %v493
        %v538 = vpack.c.b16 %v498, %v494
        %v539 = vpack.c.b16 %v499, %v495
        %v540 = vpack.c.b16 %v504, %v500
        %v541 = vpack.c.b16 %v505, %v501
        %v542 = vpack.c.b16 %v506, %v502
        %v543 = vpack.c.b16 %v507, %v503
        %v544 = vpack.c.b16 %v512, %v508
        %v545 = vpack.c.b16 %v513, %v509
        %v546 = vpack.c.b16 %v514, %v510
        %v547 = vpack.c.b16 %v515, %v511
        %580 = vmatprep.subr.bf16.mxu0 %v545
        %581 = vmatpush1.bf16.msra.mxu0 %v544
        %582 = vmatprep.subr.bf16.mxu0 %v541
        %583 = vmatpush1.bf16.msra.mxu0 %v540
        %584 = vmatprep.subr.bf16.mxu0 %v537
        %585 = vmatpush1.bf16.msra.mxu0 %v536
        %586 = vmatprep.subr.bf16.mxu0 %v533
        %587 = vmatpush1.bf16.msra.mxu0 %v532
        %588 = vmatprep.subr.bf16.mxu0 %v529
        %589 = vmatpush1.bf16.msra.mxu0 %v528
        %590 = vmatprep.subr.bf16.mxu0 %v525
        %591 = vmatpush1.bf16.msra.mxu0 %v524
        %592 = vmatprep.subr.bf16.mxu0 %v521
        %593 = vmatpush1.bf16.msra.mxu0 %v520
        %594 = vmatprep.subr.bf16.mxu0 %v517
        %595 = vmatpush1.bf16.msra.mxu0 %v516
        %596 = vmatprep.subr.bf16.mxu0 0
        %597 = vmatpush2.bf16.msra.mxu0 0
        %598 = vmatprep.subr.bf16.mxu0 0
        %599 = vmatpush2.bf16.msra.mxu0 0
        %600 = vmatprep.subr.bf16.mxu0 0
        %601 = vmatpush2.bf16.msra.mxu0 0
        %602 = vmatprep.subr.bf16.mxu0 0
        %603 = vmatpush2.bf16.msra.mxu0 0
        %604 = vmatprep.subr.bf16.mxu0 0
        %605 = vmatpush2.bf16.msra.mxu0 0
        %606 = vmatprep.subr.bf16.mxu0 0
        %607 = vmatpush2.bf16.msra.mxu0 0
        %608 = vmatprep.subr.bf16.mxu0 0
        %609 = vmatpush2.bf16.msra.mxu0 0
        %610 = vmatprep.subr.bf16.mxu0 0
        %611 = vmatpush2.bf16.msra.mxu0 0
        %612 = vmatprep.mubr.bf16.mxu0 0
        %613 = vmatmul.mubr.bf16.gmra.mxu0 %v384
        %v614 = vpop.f32.mrf.mxu0
        %v615 = vadd.f32 0.0, %v614
        %v616 = vpop.f32.mrf.mxu0
        %v617 = vadd.f32 0.0, %v616
        %v618 = vpop.f32.mrf.mxu0
        %v619 = vadd.f32 0.0, %v618
        %v620 = vpop.f32.mrf.mxu0
        %v621 = vadd.f32 0.0, %v620
        %622 = vmatprep.mubr.bf16.mxu0 0
        %623 = vmatmul.mubr.bf16.gmra.mxu0 %v385
        %v624 = vpop.f32.mrf.mxu0
        %v625 = vadd.f32 0.0, %v624
        %v626 = vpop.f32.mrf.mxu0
        %v627 = vadd.f32 0.0, %v626
        %v628 = vpop.f32.mrf.mxu0
        %v629 = vadd.f32 0.0, %v628
        %v630 = vpop.f32.mrf.mxu0
        %v631 = vadd.f32 0.0, %v630
        %632 = vmatprep.mubr.bf16.mxu0 0
        %633 = vmatmul.mubr.bf16.gmra.mxu0 %v386
        %v634 = vpop.f32.mrf.mxu0
        %v635 = vadd.f32 0.0, %v634
        %v636 = vpop.f32.mrf.mxu0
        %v637 = vadd.f32 0.0, %v636
        %v638 = vpop.f32.mrf.mxu0
        %v639 = vadd.f32 0.0, %v638
        %v640 = vpop.f32.mrf.mxu0
        %v641 = vadd.f32 0.0, %v640
        %642 = vmatprep.mubr.bf16.mxu0 0
        %643 = vmatmul.mubr.bf16.gmra.mxu0 %v387
        %v644 = vpop.f32.mrf.mxu0
        %v645 = vadd.f32 0.0, %v644
        %v646 = vpop.f32.mrf.mxu0
        %v647 = vadd.f32 0.0, %v646
        %v648 = vpop.f32.mrf.mxu0
        %v649 = vadd.f32 0.0, %v648
        %v650 = vpop.f32.mrf.mxu0
        %v651 = vadd.f32 0.0, %v650
        %652 = vdwg.mxu0
        %653 = vmatprep.subr.bf16.mxu0 %v547
        %654 = vmatpush1.bf16.msra.mxu0 %v546
        %655 = vmatprep.subr.bf16.mxu0 %v543
        %656 = vmatpush1.bf16.msra.mxu0 %v542
        %657 = vmatprep.subr.bf16.mxu0 %v539
        %658 = vmatpush1.bf16.msra.mxu0 %v538
        %659 = vmatprep.subr.bf16.mxu0 %v535
        %660 = vmatpush1.bf16.msra.mxu0 %v534
        %661 = vmatprep.subr.bf16.mxu0 %v531
        %662 = vmatpush1.bf16.msra.mxu0 %v530
        %663 = vmatprep.subr.bf16.mxu0 %v527
        %664 = vmatpush1.bf16.msra.mxu0 %v526
        %665 = vmatprep.subr.bf16.mxu0 %v523
        %666 = vmatpush1.bf16.msra.mxu0 %v522
        %667 = vmatprep.subr.bf16.mxu0 %v519
        %668 = vmatpush1.bf16.msra.mxu0 %v518
        %669 = vmatprep.subr.bf16.mxu0 0
        %670 = vmatpush2.bf16.msra.mxu0 0
        %671 = vmatprep.subr.bf16.mxu0 0
        %672 = vmatpush2.bf16.msra.mxu0 0
        %673 = vmatprep.subr.bf16.mxu0 0
        %674 = vmatpush2.bf16.msra.mxu0 0
        %675 = vmatprep.subr.bf16.mxu0 0
        %676 = vmatpush2.bf16.msra.mxu0 0
        %677 = vmatprep.subr.bf16.mxu0 0
        %678 = vmatpush2.bf16.msra.mxu0 0
        %679 = vmatprep.subr.bf16.mxu0 0
        %680 = vmatpush2.bf16.msra.mxu0 0
        %681 = vmatprep.subr.bf16.mxu0 0
        %682 = vmatpush2.bf16.msra.mxu0 0
        %683 = vmatprep.subr.bf16.mxu0 0
        %684 = vmatpush2.bf16.msra.mxu0 0
        %685 = vmatprep.mubr.bf16.mxu0 0
        %686 = vmatmul.mubr.bf16.gmra.mxu0 %v384
        %v687 = vpop.f32.mrf.mxu0
        %v688 = vadd.f32 0.0, %v687
        %v689 = vpop.f32.mrf.mxu0
        %v690 = vadd.f32 0.0, %v689
        %v691 = vpop.f32.mrf.mxu0
        %v692 = vadd.f32 0.0, %v691
        %v693 = vpop.f32.mrf.mxu0
        %v694 = vadd.f32 0.0, %v693
        %695 = vmatprep.mubr.bf16.mxu0 0
        %696 = vmatmul.mubr.bf16.gmra.mxu0 %v385
        %v697 = vpop.f32.mrf.mxu0
        %v698 = vadd.f32 0.0, %v697
        %v699 = vpop.f32.mrf.mxu0
        %v700 = vadd.f32 0.0, %v699
        %v701 = vpop.f32.mrf.mxu0
        %v702 = vadd.f32 0.0, %v701
        %v703 = vpop.f32.mrf.mxu0
        %v704 = vadd.f32 0.0, %v703
        %705 = vmatprep.mubr.bf16.mxu0 0
        %706 = vmatmul.mubr.bf16.gmra.mxu0 %v386
        %v707 = vpop.f32.mrf.mxu0
        %v708 = vadd.f32 0.0, %v707
        %v709 = vpop.f32.mrf.mxu0
        %v710 = vadd.f32 0.0, %v709
        %v711 = vpop.f32.mrf.mxu0
        %v712 = vadd.f32 0.0, %v711
        %v713 = vpop.f32.mrf.mxu0
        %v714 = vadd.f32 0.0, %v713
        %715 = vmatprep.mubr.bf16.mxu0 0
        %716 = vmatmul.mubr.bf16.gmra.mxu0 %v387
        %v717 = vpop.f32.mrf.mxu0
        %v718 = vadd.f32 0.0, %v717
        %v719 = vpop.f32.mrf.mxu0
        %v720 = vadd.f32 0.0, %v719
        %v721 = vpop.f32.mrf.mxu0
        %v722 = vadd.f32 0.0, %v721
        %v723 = vpop.f32.mrf.mxu0
        %v724 = vadd.f32 0.0, %v723
        %725 = vdwg.mxu0
        %v726 = vmul.f32 %v615, %v615
        %v727 = vmul.f32 %v617, %v617
        %v728 = vmul.f32 %v688, %v688
        %v729 = vmul.f32 %v690, %v690
        %v730 = vmul.f32 %v619, %v619
        %v731 = vmul.f32 %v621, %v621
        %v732 = vmul.f32 %v692, %v692
        %v733 = vmul.f32 %v694, %v694
        %v734 = vmul.f32 %v625, %v625
        %v735 = vmul.f32 %v627, %v627
        %v736 = vmul.f32 %v698, %v698
        %v737 = vmul.f32 %v700, %v700
        %v738 = vmul.f32 %v629, %v629
        %v739 = vmul.f32 %v631, %v631
        %v740 = vmul.f32 %v702, %v702
        %v741 = vmul.f32 %v704, %v704
        %v742 = vmul.f32 %v635, %v635
        %v743 = vmul.f32 %v637, %v637
        %v744 = vmul.f32 %v708, %v708
        %v745 = vmul.f32 %v710, %v710
        %v746 = vmul.f32 %v639, %v639
        %v747 = vmul.f32 %v641, %v641
        %v748 = vmul.f32 %v712, %v712
        %v749 = vmul.f32 %v714, %v714
        %v750 = vmul.f32 %v645, %v645
        %v751 = vmul.f32 %v647, %v647
        %v752 = vmul.f32 %v718, %v718
        %v753 = vmul.f32 %v720, %v720
        %v754 = vmul.f32 %v649, %v649
        %v755 = vmul.f32 %v651, %v651
        %v756 = vmul.f32 %v722, %v722
        %v757 = vmul.f32 %v724, %v724
        %v758 = vmul.f32 %v615, %v726
        %v759 = vmul.f32 %v617, %v727
        %v760 = vmul.f32 %v688, %v728
        %v761 = vmul.f32 %v690, %v729
        %v762 = vmul.f32 %v619, %v730
        %v763 = vmul.f32 %v621, %v731
        %v764 = vmul.f32 %v692, %v732
        %v765 = vmul.f32 %v694, %v733
        %v766 = vmul.f32 %v625, %v734
        %v767 = vmul.f32 %v627, %v735
        %v768 = vmul.f32 %v698, %v736
        %v769 = vmul.f32 %v700, %v737
        %v770 = vmul.f32 %v629, %v738
        %v771 = vmul.f32 %v631, %v739
        %v772 = vmul.f32 %v702, %v740
        %v773 = vmul.f32 %v704, %v741
        %v774 = vmul.f32 %v635, %v742
        %v775 = vmul.f32 %v637, %v743
        %v776 = vmul.f32 %v708, %v744
        %v777 = vmul.f32 %v710, %v745
        %v778 = vmul.f32 %v639, %v746
        %v779 = vmul.f32 %v641, %v747
        %v780 = vmul.f32 %v712, %v748
        %v781 = vmul.f32 %v714, %v749
        %v782 = vmul.f32 %v645, %v750
        %v783 = vmul.f32 %v647, %v751
        %v784 = vmul.f32 %v718, %v752
        %v785 = vmul.f32 %v720, %v753
        %v786 = vmul.f32 %v649, %v754
        %v787 = vmul.f32 %v651, %v755
        %v788 = vmul.f32 %v722, %v756
        %v789 = vmul.f32 %v724, %v757
        %v790 = vmul.f32 %v758, 0.044715
        %v791 = vmul.f32 %v759, 0.044715
        %v792 = vmul.f32 %v760, 0.044715
        %v793 = vmul.f32 %v761, 0.044715
        %v794 = vmul.f32 %v762, 0.044715
        %v795 = vmul.f32 %v763, 0.044715
        %v796 = vmul.f32 %v764, 0.044715
        %v797 = vmul.f32 %v765, 0.044715
        %v798 = vmul.f32 %v766, 0.044715
        %v799 = vmul.f32 %v767, 0.044715
        %v800 = vmul.f32 %v768, 0.044715
        %v801 = vmul.f32 %v769, 0.044715
        %v802 = vmul.f32 %v770, 0.044715
        %v803 = vmul.f32 %v771, 0.044715
        %v804 = vmul.f32 %v772, 0.044715
        %v805 = vmul.f32 %v773, 0.044715
        %v806 = vmul.f32 %v774, 0.044715
        %v807 = vmul.f32 %v775, 0.044715
        %v808 = vmul.f32 %v776, 0.044715
        %v809 = vmul.f32 %v777, 0.044715
        %v810 = vmul.f32 %v778, 0.044715
        %v811 = vmul.f32 %v779, 0.044715
        %v812 = vmul.f32 %v780, 0.044715
        %v813 = vmul.f32 %v781, 0.044715
        %v814 = vmul.f32 %v782, 0.044715
        %v815 = vmul.f32 %v783, 0.044715
        %v816 = vmul.f32 %v784, 0.044715
        %v817 = vmul.f32 %v785, 0.044715
        %v818 = vmul.f32 %v786, 0.044715
        %v819 = vmul.f32 %v787, 0.044715
        %v820 = vmul.f32 %v788, 0.044715
        %v821 = vmul.f32 %v789, 0.044715
        %v822 = vadd.f32 %v615, %v790
        %v823 = vadd.f32 %v617, %v791
        %v824 = vadd.f32 %v688, %v792
        %v825 = vadd.f32 %v690, %v793
        %v826 = vadd.f32 %v619, %v794
        %v827 = vadd.f32 %v621, %v795
        %v828 = vadd.f32 %v692, %v796
        %v829 = vadd.f32 %v694, %v797
        %v830 = vadd.f32 %v625, %v798
        %v831 = vadd.f32 %v627, %v799
        %v832 = vadd.f32 %v698, %v800
        %v833 = vadd.f32 %v700, %v801
        %v834 = vadd.f32 %v629, %v802
        %v835 = vadd.f32 %v631, %v803
        %v836 = vadd.f32 %v702, %v804
        %v837 = vadd.f32 %v704, %v805
        %v838 = vadd.f32 %v635, %v806
        %v839 = vadd.f32 %v637, %v807
        %v840 = vadd.f32 %v708, %v808
        %v841 = vadd.f32 %v710, %v809
        %v842 = vadd.f32 %v639, %v810
        %v843 = vadd.f32 %v641, %v811
        %v844 = vadd.f32 %v712, %v812
        %v845 = vadd.f32 %v714, %v813
        %v846 = vadd.f32 %v645, %v814
        %v847 = vadd.f32 %v647, %v815
        %v848 = vadd.f32 %v718, %v816
        %v849 = vadd.f32 %v720, %v817
        %v850 = vadd.f32 %v649, %v818
        %v851 = vadd.f32 %v651, %v819
        %v852 = vadd.f32 %v722, %v820
        %v853 = vadd.f32 %v724, %v821
        %v854 = vmul.f32 %v822, 0.7978846
        %v855 = vmul.f32 %v823, 0.7978846
        %v856 = vmul.f32 %v824, 0.7978846
        %v857 = vmul.f32 %v825, 0.7978846
        %v858 = vmul.f32 %v826, 0.7978846
        %v859 = vmul.f32 %v827, 0.7978846
        %v860 = vmul.f32 %v828, 0.7978846
        %v861 = vmul.f32 %v829, 0.7978846
        %v862 = vmul.f32 %v830, 0.7978846
        %v863 = vmul.f32 %v831, 0.7978846
        %v864 = vmul.f32 %v832, 0.7978846
        %v865 = vmul.f32 %v833, 0.7978846
        %v866 = vmul.f32 %v834, 0.7978846
        %v867 = vmul.f32 %v835, 0.7978846
        %v868 = vmul.f32 %v836, 0.7978846
        %v869 = vmul.f32 %v837, 0.7978846
        %v870 = vmul.f32 %v838, 0.7978846
        %v871 = vmul.f32 %v839, 0.7978846
        %v872 = vmul.f32 %v840, 0.7978846
        %v873 = vmul.f32 %v841, 0.7978846
        %v874 = vmul.f32 %v842, 0.7978846
        %v875 = vmul.f32 %v843, 0.7978846
        %v876 = vmul.f32 %v844, 0.7978846
        %v877 = vmul.f32 %v845, 0.7978846
        %v878 = vmul.f32 %v846, 0.7978846
        %v879 = vmul.f32 %v847, 0.7978846
        %v880 = vmul.f32 %v848, 0.7978846
        %v881 = vmul.f32 %v849, 0.7978846
        %v882 = vmul.f32 %v850, 0.7978846
        %v883 = vmul.f32 %v851, 0.7978846
        %v884 = vmul.f32 %v852, 0.7978846
        %v885 = vmul.f32 %v853, 0.7978846
        %v886 = vtanh.pop %v854
        %v887 = vtanh.pop %v855
        %v888 = vtanh.pop %v856
        %v889 = vtanh.pop %v857
        %v890 = vtanh.pop %v858
        %v891 = vtanh.pop %v859
        %v892 = vtanh.pop %v860
        %v893 = vtanh.pop %v861
        %v894 = vtanh.pop %v862
        %v895 = vtanh.pop %v863
        %v896 = vtanh.pop %v864
        %v897 = vtanh.pop %v865
        %v898 = vtanh.pop %v866
        %v899 = vtanh.pop %v867
        %v900 = vtanh.pop %v868
        %v901 = vtanh.pop %v869
        %v902 = vtanh.pop %v870
        %v903 = vtanh.pop %v871
        %v904 = vtanh.pop %v872
        %v905 = vtanh.pop %v873
        %v906 = vtanh.pop %v874
        %v907 = vtanh.pop %v875
        %v908 = vtanh.pop %v876
        %v909 = vtanh.pop %v877
        %v910 = vtanh.pop %v878
        %v911 = vtanh.pop %v879
        %v912 = vtanh.pop %v880
        %v913 = vtanh.pop %v881
        %v914 = vtanh.pop %v882
        %v915 = vtanh.pop %v883
        %v916 = vtanh.pop %v884
        %v917 = vtanh.pop %v885
        %v918 = vadd.f32 %v886, 1.0
        %v919 = vadd.f32 %v887, 1.0
        %v920 = vadd.f32 %v888, 1.0
        %v921 = vadd.f32 %v889, 1.0
        %v922 = vadd.f32 %v890, 1.0
        %v923 = vadd.f32 %v891, 1.0
        %v924 = vadd.f32 %v892, 1.0
        %v925 = vadd.f32 %v893, 1.0
        %v926 = vadd.f32 %v894, 1.0
        %v927 = vadd.f32 %v895, 1.0
        %v928 = vadd.f32 %v896, 1.0
        %v929 = vadd.f32 %v897, 1.0
        %v930 = vadd.f32 %v898, 1.0
        %v931 = vadd.f32 %v899, 1.0
        %v932 = vadd.f32 %v900, 1.0
        %v933 = vadd.f32 %v901, 1.0
        %v934 = vadd.f32 %v902, 1.0
        %v935 = vadd.f32 %v903, 1.0
        %v936 = vadd.f32 %v904, 1.0
        %v937 = vadd.f32 %v905, 1.0
        %v938 = vadd.f32 %v906, 1.0
        %v939 = vadd.f32 %v907, 1.0
        %v940 = vadd.f32 %v908, 1.0
        %v941 = vadd.f32 %v909, 1.0
        %v942 = vadd.f32 %v910, 1.0
        %v943 = vadd.f32 %v911, 1.0
        %v944 = vadd.f32 %v912, 1.0
        %v945 = vadd.f32 %v913, 1.0
        %v946 = vadd.f32 %v914, 1.0
        %v947 = vadd.f32 %v915, 1.0
        %v948 = vadd.f32 %v916, 1.0
        %v949 = vadd.f32 %v917, 1.0
        %v950 = vmul.f32 %v918, 0.5
        %v951 = vmul.f32 %v919, 0.5
        %v952 = vmul.f32 %v920, 0.5
        %v953 = vmul.f32 %v921, 0.5
        %v954 = vmul.f32 %v922, 0.5
        %v955 = vmul.f32 %v923, 0.5
        %v956 = vmul.f32 %v924, 0.5
        %v957 = vmul.f32 %v925, 0.5
        %v958 = vmul.f32 %v926, 0.5
        %v959 = vmul.f32 %v927, 0.5
        %v960 = vmul.f32 %v928, 0.5
        %v961 = vmul.f32 %v929, 0.5
        %v962 = vmul.f32 %v930, 0.5
        %v963 = vmul.f32 %v931, 0.5
        %v964 = vmul.f32 %v932, 0.5
        %v965 = vmul.f32 %v933, 0.5
        %v966 = vmul.f32 %v934, 0.5
        %v967 = vmul.f32 %v935, 0.5
        %v968 = vmul.f32 %v936, 0.5
        %v969 = vmul.f32 %v937, 0.5
        %v970 = vmul.f32 %v938, 0.5
        %v971 = vmul.f32 %v939, 0.5
        %v972 = vmul.f32 %v940, 0.5
        %v973 = vmul.f32 %v941, 0.5
        %v974 = vmul.f32 %v942, 0.5
        %v975 = vmul.f32 %v943, 0.5
        %v976 = vmul.f32 %v944, 0.5
        %v977 = vmul.f32 %v945, 0.5
        %v978 = vmul.f32 %v946, 0.5
        %v979 = vmul.f32 %v947, 0.5
        %v980 = vmul.f32 %v948, 0.5
        %v981 = vmul.f32 %v949, 0.5
        %v982 = vmul.f32 %v615, %v950
        %v983 = vmul.f32 %v617, %v951
        %v984 = vmul.f32 %v688, %v952
        %v985 = vmul.f32 %v690, %v953
        %v986 = vmul.f32 %v619, %v954
        %v987 = vmul.f32 %v621, %v955
        %v988 = vmul.f32 %v692, %v956
        %v989 = vmul.f32 %v694, %v957
        %v990 = vmul.f32 %v625, %v958
        %v991 = vmul.f32 %v627, %v959
        %v992 = vmul.f32 %v698, %v960
        %v993 = vmul.f32 %v700, %v961
        %v994 = vmul.f32 %v629, %v962
        %v995 = vmul.f32 %v631, %v963
        %v996 = vmul.f32 %v702, %v964
        %v997 = vmul.f32 %v704, %v965
        %v998 = vmul.f32 %v635, %v966
        %v999 = vmul.f32 %v637, %v967
        %v1000 = vmul.f32 %v708, %v968
        %v1001 = vmul.f32 %v710, %v969
        %v1002 = vmul.f32 %v639, %v970
        %v1003 = vmul.f32 %v641, %v971
        %v1004 = vmul.f32 %v712, %v972
        %v1005 = vmul.f32 %v714, %v973
        %v1006 = vmul.f32 %v645, %v974
        %v1007 = vmul.f32 %v647, %v975
        %v1008 = vmul.f32 %v718, %v976
        %v1009 = vmul.f32 %v720, %v977
        %v1010 = vmul.f32 %v649, %v978
        %v1011 = vmul.f32 %v651, %v979
        %v1012 = vmul.f32 %v722, %v980
        %v1013 = vmul.f32 %v724, %v981
        %v1014 = vpack.c.bf16 %v986, %v982
        %v1015 = vpack.c.bf16 %v987, %v983
        %v1016 = vpack.c.bf16 %v988, %v984
        %v1017 = vpack.c.bf16 %v989, %v985
        %v1018 = vpack.c.bf16 %v994, %v990
        %v1019 = vpack.c.bf16 %v995, %v991
        %v1020 = vpack.c.bf16 %v996, %v992
        %v1021 = vpack.c.bf16 %v997, %v993
        %v1022 = vpack.c.bf16 %v1002, %v998
        %v1023 = vpack.c.bf16 %v1003, %v999
        %v1024 = vpack.c.bf16 %v1004, %v1000
        %v1025 = vpack.c.bf16 %v1005, %v1001
        %v1026 = vpack.c.bf16 %v1010, %v1006
        %v1027 = vpack.c.bf16 %v1011, %v1007
        %v1028 = vpack.c.bf16 %v1012, %v1008
        %v1029 = vpack.c.bf16 %v1013, %v1009
        %v1030 = vld [vmem:[%s311] sm:$0xf]
        %v1031 = vld [vmem:[%s311 + $0x4] sm:$0xf]
        %v1032 = vld [vmem:[%s311 + $0x8] sm:$0xf]
        %v1033 = vld [vmem:[%s311 + $0xc] sm:$0xf]
        %v1034 = vld [vmem:[%s311 + $0x10] sm:$0xf]
        %v1035 = vld [vmem:[%s311 + $0x14] sm:$0xf]
        %v1036 = vld [vmem:[%s311 + $0x18] sm:$0xf]
        %v1037 = vld [vmem:[%s311 + $0x1c] sm:$0xf]
        %v1038 = vld [vmem:[%s311 + $0x20] sm:$0xf]
        %v1039 = vld [vmem:[%s311 + $0x24] sm:$0xf]
        %v1040 = vld [vmem:[%s311 + $0x28] sm:$0xf]
        %v1041 = vld [vmem:[%s311 + $0x2c] sm:$0xf]
        %v1042 = vld [vmem:[%s311 + $0x30] sm:$0xf]
        %v1043 = vld [vmem:[%s311 + $0x34] sm:$0xf]
        %v1044 = vld [vmem:[%s311 + $0x38] sm:$0xf]
        %v1045 = vld [vmem:[%s311 + $0x3c] sm:$0xf]
        %v1046 = vld [vmem:[%s311 + $0x40] sm:$0xf]
        %v1047 = vld [vmem:[%s311 + $0x44] sm:$0xf]
        %v1048 = vld [vmem:[%s311 + $0x48] sm:$0xf]
        %v1049 = vld [vmem:[%s311 + $0x4c] sm:$0xf]
        %v1050 = vld [vmem:[%s311 + $0x50] sm:$0xf]
        %v1051 = vld [vmem:[%s311 + $0x54] sm:$0xf]
        %v1052 = vld [vmem:[%s311 + $0x58] sm:$0xf]
        %v1053 = vld [vmem:[%s311 + $0x5c] sm:$0xf]
        %v1054 = vld [vmem:[%s311 + $0x60] sm:$0xf]
        %v1055 = vld [vmem:[%s311 + $0x64] sm:$0xf]
        %v1056 = vld [vmem:[%s311 + $0x68] sm:$0xf]
        %v1057 = vld [vmem:[%s311 + $0x6c] sm:$0xf]
        %v1058 = vld [vmem:[%s311 + $0x70] sm:$0xf]
        %v1059 = vld [vmem:[%s311 + $0x74] sm:$0xf]
        %v1060 = vld [vmem:[%s311 + $0x78] sm:$0xf]
        %v1061 = vld [vmem:[%s311 + $0x7c] sm:$0xf]
        %v1062 = vld [vmem:[%s311 + $0x80] sm:$0xf]
        %v1063 = vld [vmem:[%s311 + $0x84] sm:$0xf]
        %v1064 = vld [vmem:[%s311 + $0x88] sm:$0xf]
        %v1065 = vld [vmem:[%s311 + $0x8c] sm:$0xf]
        %v1066 = vld [vmem:[%s311 + $0x90] sm:$0xf]
        %v1067 = vld [vmem:[%s311 + $0x94] sm:$0xf]
        %v1068 = vld [vmem:[%s311 + $0x98] sm:$0xf]
        %v1069 = vld [vmem:[%s311 + $0x9c] sm:$0xf]
        %v1070 = vld [vmem:[%s311 + $0xa0] sm:$0xf]
        %v1071 = vld [vmem:[%s311 + $0xa4] sm:$0xf]
        %v1072 = vld [vmem:[%s311 + $0xa8] sm:$0xf]
        %v1073 = vld [vmem:[%s311 + $0xac] sm:$0xf]
        %v1074 = vld [vmem:[%s311 + $0xb0] sm:$0xf]
        %v1075 = vld [vmem:[%s311 + $0xb4] sm:$0xf]
        %v1076 = vld [vmem:[%s311 + $0xb8] sm:$0xf]
        %v1077 = vld [vmem:[%s311 + $0xbc] sm:$0xf]
        %v1078 = vld [vmem:[%s311 + $0xc0] sm:$0xf]
        %v1079 = vld [vmem:[%s311 + $0xc4] sm:$0xf]
        %v1080 = vld [vmem:[%s311 + $0xc8] sm:$0xf]
        %v1081 = vld [vmem:[%s311 + $0xcc] sm:$0xf]
        %v1082 = vld [vmem:[%s311 + $0xd0] sm:$0xf]
        %v1083 = vld [vmem:[%s311 + $0xd4] sm:$0xf]
        %v1084 = vld [vmem:[%s311 + $0xd8] sm:$0xf]
        %v1085 = vld [vmem:[%s311 + $0xdc] sm:$0xf]
        %v1086 = vld [vmem:[%s311 + $0xe0] sm:$0xf]
        %v1087 = vld [vmem:[%s311 + $0xe4] sm:$0xf]
        %v1088 = vld [vmem:[%s311 + $0xe8] sm:$0xf]
        %v1089 = vld [vmem:[%s311 + $0xec] sm:$0xf]
        %v1090 = vld [vmem:[%s311 + $0xf0] sm:$0xf]
        %v1091 = vld [vmem:[%s311 + $0xf4] sm:$0xf]
        %v1092 = vld [vmem:[%s311 + $0xf8] sm:$0xf]
        %v1093 = vld [vmem:[%s311 + $0xfc] sm:$0xf]
        %v1158 = vunpack.c.l.b16 %v1030
        %v1159 = vunpack.c.l.b16 %v1031
        %v1160 = vunpack.c.l.b16 %v1032
        %v1161 = vunpack.c.l.b16 %v1033
        %v1162 = vunpack.c.l.b16 %v1034
        %v1163 = vunpack.c.l.b16 %v1035
        %v1164 = vunpack.c.l.b16 %v1036
        %v1165 = vunpack.c.l.b16 %v1037
        %v1166 = vunpack.c.l.b16 %v1038
        %v1167 = vunpack.c.l.b16 %v1039
        %v1168 = vunpack.c.l.b16 %v1040
        %v1169 = vunpack.c.l.b16 %v1041
        %v1170 = vunpack.c.l.b16 %v1042
        %v1171 = vunpack.c.l.b16 %v1043
        %v1172 = vunpack.c.l.b16 %v1044
        %v1173 = vunpack.c.l.b16 %v1045
        %v1174 = vunpack.c.l.b16 %v1046
        %v1175 = vunpack.c.l.b16 %v1047
        %v1176 = vunpack.c.l.b16 %v1048
        %v1177 = vunpack.c.l.b16 %v1049
        %v1178 = vunpack.c.l.b16 %v1050
        %v1179 = vunpack.c.l.b16 %v1051
        %v1180 = vunpack.c.l.b16 %v1052
        %v1181 = vunpack.c.l.b16 %v1053
        %v1182 = vunpack.c.l.b16 %v1054
        %v1183 = vunpack.c.l.b16 %v1055
        %v1184 = vunpack.c.l.b16 %v1056
        %v1185 = vunpack.c.l.b16 %v1057
        %v1186 = vunpack.c.l.b16 %v1058
        %v1187 = vunpack.c.l.b16 %v1059
        %v1188 = vunpack.c.l.b16 %v1060
        %v1189 = vunpack.c.l.b16 %v1061
        %v1190 = vunpack.c.l.b16 %v1062
        %v1191 = vunpack.c.l.b16 %v1063
        %v1192 = vunpack.c.l.b16 %v1064
        %v1193 = vunpack.c.l.b16 %v1065
        %v1194 = vunpack.c.l.b16 %v1066
        %v1195 = vunpack.c.l.b16 %v1067
        %v1196 = vunpack.c.l.b16 %v1068
        %v1197 = vunpack.c.l.b16 %v1069
        %v1198 = vunpack.c.l.b16 %v1070
        %v1199 = vunpack.c.l.b16 %v1071
        %v1200 = vunpack.c.l.b16 %v1072
        %v1201 = vunpack.c.l.b16 %v1073
        %v1202 = vunpack.c.l.b16 %v1074
        %v1203 = vunpack.c.l.b16 %v1075
        %v1204 = vunpack.c.l.b16 %v1076
        %v1205 = vunpack.c.l.b16 %v1077
        %v1206 = vunpack.c.l.b16 %v1078
        %v1207 = vunpack.c.l.b16 %v1079
        %v1208 = vunpack.c.l.b16 %v1080
        %v1209 = vunpack.c.l.b16 %v1081
        %v1210 = vunpack.c.l.b16 %v1082
        %v1211 = vunpack.c.l.b16 %v1083
        %v1212 = vunpack.c.l.b16 %v1084
        %v1213 = vunpack.c.l.b16 %v1085
        %v1214 = vunpack.c.l.b16 %v1086
        %v1215 = vunpack.c.l.b16 %v1087
        %v1216 = vunpack.c.l.b16 %v1088
        %v1217 = vunpack.c.l.b16 %v1089
        %v1218 = vunpack.c.l.b16 %v1090
        %v1219 = vunpack.c.l.b16 %v1091
        %v1220 = vunpack.c.l.b16 %v1092
        %v1221 = vunpack.c.l.b16 %v1093
        %v1222 = vpack.c.b16 %v1159, %v1158
        %v1223 = vpack.c.b16 %v1161, %v1160
        %v1224 = vpack.c.b16 %v1163, %v1162
        %v1225 = vpack.c.b16 %v1165, %v1164
        %v1226 = vpack.c.b16 %v1167, %v1166
        %v1227 = vpack.c.b16 %v1169, %v1168
        %v1228 = vpack.c.b16 %v1171, %v1170
        %v1229 = vpack.c.b16 %v1173, %v1172
        %v1230 = vpack.c.b16 %v1175, %v1174
        %v1231 = vpack.c.b16 %v1177, %v1176
        %v1232 = vpack.c.b16 %v1179, %v1178
        %v1233 = vpack.c.b16 %v1181, %v1180
        %v1234 = vpack.c.b16 %v1183, %v1182
        %v1235 = vpack.c.b16 %v1185, %v1184
        %v1236 = vpack.c.b16 %v1187, %v1186
        %v1237 = vpack.c.b16 %v1189, %v1188
        %v1238 = vpack.c.b16 %v1191, %v1190
        %v1239 = vpack.c.b16 %v1193, %v1192
        %v1240 = vpack.c.b16 %v1195, %v1194
        %v1241 = vpack.c.b16 %v1197, %v1196
        %v1242 = vpack.c.b16 %v1199, %v1198
        %v1243 = vpack.c.b16 %v1201, %v1200
        %v1244 = vpack.c.b16 %v1203, %v1202
        %v1245 = vpack.c.b16 %v1205, %v1204
        %v1246 = vpack.c.b16 %v1207, %v1206
        %v1247 = vpack.c.b16 %v1209, %v1208
        %v1248 = vpack.c.b16 %v1211, %v1210
        %v1249 = vpack.c.b16 %v1213, %v1212
        %v1250 = vpack.c.b16 %v1215, %v1214
        %v1251 = vpack.c.b16 %v1217, %v1216
        %v1252 = vpack.c.b16 %v1219, %v1218
        %v1253 = vpack.c.b16 %v1221, %v1220
        %1286 = vmatprep.subr.bf16.mxu0 0
        %1287 = vmatpush1.bf16.msra.mxu0 %v1229
        %1288 = vmatprep.subr.bf16.mxu0 0
        %1289 = vmatpush1.bf16.msra.mxu0 %v1228
        %1290 = vmatprep.subr.bf16.mxu0 0
        %1291 = vmatpush1.bf16.msra.mxu0 %v1227
        %1292 = vmatprep.subr.bf16.mxu0 0
        %1293 = vmatpush1.bf16.msra.mxu0 %v1226
        %1294 = vmatprep.subr.bf16.mxu0 0
        %1295 = vmatpush1.bf16.msra.mxu0 %v1225
        %1296 = vmatprep.subr.bf16.mxu0 0
        %1297 = vmatpush1.bf16.msra.mxu0 %v1224
        %1298 = vmatprep.subr.bf16.mxu0 0
        %1299 = vmatpush1.bf16.msra.mxu0 %v1223
        %1300 = vmatprep.subr.bf16.mxu0 0
        %1301 = vmatpush1.bf16.msra.mxu0 %v1222
        %1302 = vmatprep.subr.bf16.mxu0 0
        %1303 = vmatpush2.bf16.msra.mxu0 %v1237
        %1304 = vmatprep.subr.bf16.mxu0 0
        %1305 = vmatpush2.bf16.msra.mxu0 %v1236
        %1306 = vmatprep.subr.bf16.mxu0 0
        %1307 = vmatpush2.bf16.msra.mxu0 %v1235
        %1308 = vmatprep.subr.bf16.mxu0 0
        %1309 = vmatpush2.bf16.msra.mxu0 %v1234
        %1310 = vmatprep.subr.bf16.mxu0 0
        %1311 = vmatpush2.bf16.msra.mxu0 %v1233
        %1312 = vmatprep.subr.bf16.mxu0 0
        %1313 = vmatpush2.bf16.msra.mxu0 %v1232
        %1314 = vmatprep.subr.bf16.mxu0 0
        %1315 = vmatpush2.bf16.msra.mxu0 %v1231
        %1316 = vmatprep.subr.bf16.mxu0 0
        %1317 = vmatpush2.bf16.msra.mxu0 %v1230
        %1318 = vmatprep.mubr.bf16.mxu0 %v1015
        %1319 = vmatmul.mubr.bf16.gmra.mxu0 %v1014
        %v1320 = vpop.f32.mrf.mxu0
        %v1321 = vadd.f32 0.0, %v1320
        %v1322 = vpop.f32.mrf.mxu0
        %v1323 = vpop.f32.mrf.mxu0
        %v1324 = vadd.f32 0.0, %v1323
        %v1325 = vpop.f32.mrf.mxu0
        %1326 = vmatprep.mubr.bf16.mxu0 %v1019
        %1327 = vmatmul.mubr.bf16.gmra.mxu0 %v1018
        %v1328 = vpop.f32.mrf.mxu0
        %v1329 = vadd.f32 0.0, %v1328
        %v1330 = vpop.f32.mrf.mxu0
        %v1331 = vpop.f32.mrf.mxu0
        %v1332 = vadd.f32 0.0, %v1331
        %v1333 = vpop.f32.mrf.mxu0
        %1334 = vmatprep.mubr.bf16.mxu0 %v1023
        %1335 = vmatmul.mubr.bf16.gmra.mxu0 %v1022
        %v1336 = vpop.f32.mrf.mxu0
        %v1337 = vadd.f32 0.0, %v1336
        %v1338 = vpop.f32.mrf.mxu0
        %v1339 = vpop.f32.mrf.mxu0
        %v1340 = vadd.f32 0.0, %v1339
        %v1341 = vpop.f32.mrf.mxu0
        %1342 = vmatprep.mubr.bf16.mxu0 %v1027
        %1343 = vmatmul.mubr.bf16.gmra.mxu0 %v1026
        %v1344 = vpop.f32.mrf.mxu0
        %v1345 = vadd.f32 0.0, %v1344
        %v1346 = vpop.f32.mrf.mxu0
        %v1347 = vpop.f32.mrf.mxu0
        %v1348 = vadd.f32 0.0, %v1347
        %v1349 = vpop.f32.mrf.mxu0
        %1350 = vdwg.mxu0
        %1351 = vmatprep.subr.bf16.mxu0 0
        %1352 = vmatpush1.bf16.msra.mxu0 %v1245
        %1353 = vmatprep.subr.bf16.mxu0 0
        %1354 = vmatpush1.bf16.msra.mxu0 %v1244
        %1355 = vmatprep.subr.bf16.mxu0 0
        %1356 = vmatpush1.bf16.msra.mxu0 %v1243
        %1357 = vmatprep.subr.bf16.mxu0 0
        %1358 = vmatpush1.bf16.msra.mxu0 %v1242
        %1359 = vmatprep.subr.bf16.mxu0 0
        %1360 = vmatpush1.bf16.msra.mxu0 %v1241
        %1361 = vmatprep.subr.bf16.mxu0 0
        %1362 = vmatpush1.bf16.msra.mxu0 %v1240
        %1363 = vmatprep.subr.bf16.mxu0 0
        %1364 = vmatpush1.bf16.msra.mxu0 %v1239
        %1365 = vmatprep.subr.bf16.mxu0 0
        %1366 = vmatpush1.bf16.msra.mxu0 %v1238
        %1367 = vmatprep.subr.bf16.mxu0 0
        %1368 = vmatpush2.bf16.msra.mxu0 %v1253
        %1369 = vmatprep.subr.bf16.mxu0 0
        %1370 = vmatpush2.bf16.msra.mxu0 %v1252
        %1371 = vmatprep.subr.bf16.mxu0 0
        %1372 = vmatpush2.bf16.msra.mxu0 %v1251
        %1373 = vmatprep.subr.bf16.mxu0 0
        %1374 = vmatpush2.bf16.msra.mxu0 %v1250
        %1375 = vmatprep.subr.bf16.mxu0 0
        %1376 = vmatpush2.bf16.msra.mxu0 %v1249
        %1377 = vmatprep.subr.bf16.mxu0 0
        %1378 = vmatpush2.bf16.msra.mxu0 %v1248
        %1379 = vmatprep.subr.bf16.mxu0 0
        %1380 = vmatpush2.bf16.msra.mxu0 %v1247
        %1381 = vmatprep.subr.bf16.mxu0 0
        %1382 = vmatpush2.bf16.msra.mxu0 %v1246
        %1383 = vmatprep.mubr.bf16.mxu0 %v1017
        %1384 = vmatmul.mubr.bf16.gmra.mxu0 %v1016
        %v1385 = vpop.f32.mrf.mxu0
        %v1386 = vadd.f32 %v1321, %v1385
        %v1387 = vpop.f32.mrf.mxu0
        %v1388 = vpop.f32.mrf.mxu0
        %v1389 = vadd.f32 %v1324, %v1388
        %v1390 = vpop.f32.mrf.mxu0
        %1391 = vmatprep.mubr.bf16.mxu0 %v1021
        %1392 = vmatmul.mubr.bf16.gmra.mxu0 %v1020
        %v1393 = vpop.f32.mrf.mxu0
        %v1394 = vadd.f32 %v1329, %v1393
        %v1395 = vpop.f32.mrf.mxu0
        %v1396 = vpop.f32.mrf.mxu0
        %v1397 = vadd.f32 %v1332, %v1396
        %v1398 = vpop.f32.mrf.mxu0
        %1399 = vmatprep.mubr.bf16.mxu0 %v1025
        %1400 = vmatmul.mubr.bf16.gmra.mxu0 %v1024
        %v1401 = vpop.f32.mrf.mxu0
        %v1402 = vadd.f32 %v1337, %v1401
        %v1403 = vpop.f32.mrf.mxu0
        %v1404 = vpop.f32.mrf.mxu0
        %v1405 = vadd.f32 %v1340, %v1404
        %v1406 = vpop.f32.mrf.mxu0
        %1407 = vmatprep.mubr.bf16.mxu0 %v1029
        %1408 = vmatmul.mubr.bf16.gmra.mxu0 %v1028
        %v1409 = vpop.f32.mrf.mxu0
        %v1410 = vadd.f32 %v1345, %v1409
        %v1411 = vpop.f32.mrf.mxu0
        %v1412 = vpop.f32.mrf.mxu0
        %v1413 = vadd.f32 %v1348, %v1412
        %v1414 = vpop.f32.mrf.mxu0
        %1415 = vdwg.mxu0
        %p1416 = scmp.eq.s32.totalorder %s56, 0
        // Predicated region
        $region45: #{tpu_custom_call.1} parent=35 // pred_check
          %p1417 = pneg %p1416
        $region46: #{tpu_custom_call.1} parent=35 // pred_check_branch
          %1419 = sbr.rel (%p1417) target = $region48
        $region47: #{tpu_custom_call.1} parent=35 // pred_region
          %1420 = vst [vmem:[#allocation2] sm:$0xff] %v1386
          %1421 = vst [vmem:[#allocation2 + $0x8] sm:$0xff] %v1389
          %1422 = vst [vmem:[#allocation2 + $0x10] sm:$0xff] %v1394
          %1423 = vst [vmem:[#allocation2 + $0x18] sm:$0xff] %v1397
          %1424 = vst [vmem:[#allocation2 + $0x20] sm:$0xff] %v1402
          %1425 = vst [vmem:[#allocation2 + $0x28] sm:$0xff] %v1405
          %1426 = vst [vmem:[#allocation2 + $0x30] sm:$0xff] %v1410
          %1427 = vst [vmem:[#allocation2 + $0x38] sm:$0xff] %v1413
        $region48: #{tpu_custom_call.1} parent=35 // pred_fallthru
          _
        %p1428 = scmp.ne.s32.totalorder %s56, 0
        // Predicated region
        $region49: #{tpu_custom_call.1} parent=35 // pred_check
          %p1429 = pneg %p1428
        $region50: #{tpu_custom_call.1} parent=35 // pred_check_branch
          %1431 = sbr.rel (%p1429) target = $region52
        $region51: #{tpu_custom_call.1} parent=35 // pred_region
          %v1432 = vld [vmem:[#allocation2] sm:$0xff]
          %v1433 = vld [vmem:[#allocation2 + $0x8] sm:$0xff]
          %v1434 = vld [vmem:[#allocation2 + $0x10] sm:$0xff]
          %v1435 = vld [vmem:[#allocation2 + $0x18] sm:$0xff]
          %v1436 = vld [vmem:[#allocation2 + $0x20] sm:$0xff]
          %v1437 = vld [vmem:[#allocation2 + $0x28] sm:$0xff]
          %v1438 = vld [vmem:[#allocation2 + $0x30] sm:$0xff]
          %v1439 = vld [vmem:[#allocation2 + $0x38] sm:$0xff]
          %v1440 = vadd.f32 %v1432, %v1386
          %v1441 = vadd.f32 %v1433, %v1389
          %v1442 = vadd.f32 %v1434, %v1394
          %v1443 = vadd.f32 %v1435, %v1397
          %v1444 = vadd.f32 %v1436, %v1402
          %v1445 = vadd.f32 %v1437, %v1405
          %v1446 = vadd.f32 %v1438, %v1410
          %v1447 = vadd.f32 %v1439, %v1413
          %1448 = vst [vmem:[#allocation2] sm:$0xff] %v1440
          %1449 = vst [vmem:[#allocation2 + $0x8] sm:$0xff] %v1441
          %1450 = vst [vmem:[#allocation2 + $0x10] sm:$0xff] %v1442
          %1451 = vst [vmem:[#allocation2 + $0x18] sm:$0xff] %v1443
          %1452 = vst [vmem:[#allocation2 + $0x20] sm:$0xff] %v1444
          %1453 = vst [vmem:[#allocation2 + $0x28] sm:$0xff] %v1445
          %1454 = vst [vmem:[#allocation2 + $0x30] sm:$0xff] %v1446
          %1455 = vst [vmem:[#allocation2 + $0x38] sm:$0xff] %v1447
        $region52: #{tpu_custom_call.1} parent=35 // pred_fallthru
          _
        %p1456 = scmp.eq.s32.totalorder %s56, 1
        // Predicated region
        $region53: #{tpu_custom_call.1} parent=35 // pred_check
          %p1457 = pneg %p1456
        $region54: #{tpu_custom_call.1} parent=35 // pred_check_branch
          %1459 = sbr.rel (%p1457) target = $region56
        $region55: #{tpu_custom_call.1} parent=35 // pred_region
          %v1460 = vlaneseq
          %v1461 = vshrl.u32 %v1460, 7
          %v1462 = vadd.s32 %v1461, 8
          %v1463 = vadd.s32 %v1461, 16
          %v1464 = vadd.s32 %v1461, 24
          %v1465 = vadd.s32 %v1461, 32
          %v1466 = vadd.s32 %v1461, 40
          %v1467 = vadd.s32 %v1461, 48
          %v1468 = vadd.s32 %v1461, 56
          %s1469 = sld [smem:[#allocation6 + %s55]]
          %v1470 = vstv %s1469
          %vm1471 = vcmp.ge.s32.totalorder %v1461, %v1470
          %vm1472 = vcmp.ge.s32.totalorder %v1462, %v1470
          %vm1473 = vcmp.ge.s32.totalorder %v1463, %v1470
          %vm1474 = vcmp.ge.s32.totalorder %v1464, %v1470
          %vm1475 = vcmp.ge.s32.totalorder %v1465, %v1470
          %vm1476 = vcmp.ge.s32.totalorder %v1466, %v1470
          %vm1477 = vcmp.ge.s32.totalorder %v1467, %v1470
          %vm1478 = vcmp.ge.s32.totalorder %v1468, %v1470
          %s1479 = sld [smem:[#allocation7 + %s55]]
          %v1480 = vstv %s1479
          %vm1481 = vcmp.lt.s32.totalorder %v1461, %v1480
          %vm1482 = vcmp.lt.s32.totalorder %v1462, %v1480
          %vm1483 = vcmp.lt.s32.totalorder %v1463, %v1480
          %vm1484 = vcmp.lt.s32.totalorder %v1464, %v1480
          %vm1485 = vcmp.lt.s32.totalorder %v1465, %v1480
          %vm1486 = vcmp.lt.s32.totalorder %v1466, %v1480
          %vm1487 = vcmp.lt.s32.totalorder %v1467, %v1480
          %vm1488 = vcmp.lt.s32.totalorder %v1468, %v1480
          %vm1489 = vmand %vm1471, %vm1481
          %vm1490 = vmand %vm1472, %vm1482
          %vm1491 = vmand %vm1473, %vm1483
          %vm1492 = vmand %vm1474, %vm1484
          %vm1493 = vmand %vm1475, %vm1485
          %vm1494 = vmand %vm1476, %vm1486
          %vm1495 = vmand %vm1477, %vm1487
          %vm1496 = vmand %vm1478, %vm1488
          %v1497 = vld [vmem:[%s358] sm:$0xff]
          %v1498 = vld [vmem:[%s358 + $0x8] sm:$0xff]
          %v1499 = vld [vmem:[%s358 + $0x10] sm:$0xff]
          %v1500 = vld [vmem:[%s358 + $0x18] sm:$0xff]
          %v1501 = vld [vmem:[%s358 + $0x20] sm:$0xff]
          %v1502 = vld [vmem:[%s358 + $0x28] sm:$0xff]
          %v1503 = vld [vmem:[%s358 + $0x30] sm:$0xff]
          %v1504 = vld [vmem:[%s358 + $0x38] sm:$0xff]
          %v1505 = vld [vmem:[#allocation2] sm:$0xff]
          %v1506 = vld [vmem:[#allocation2 + $0x8] sm:$0xff]
          %v1507 = vld [vmem:[#allocation2 + $0x10] sm:$0xff]
          %v1508 = vld [vmem:[#allocation2 + $0x18] sm:$0xff]
          %v1509 = vld [vmem:[#allocation2 + $0x20] sm:$0xff]
          %v1510 = vld [vmem:[#allocation2 + $0x28] sm:$0xff]
          %v1511 = vld [vmem:[#allocation2 + $0x30] sm:$0xff]
          %v1512 = vld [vmem:[#allocation2 + $0x38] sm:$0xff]
          %1514 = vset.pattern.permute.xlu0 0
          %1515 = vperm.xlu0 %1514, %v1497
          %v1516 = vpop.permute.xlu0 %1515
          %1519 = vset.pattern.permute.xlu0 0
          %1520 = vperm.xlu0 %1519, %v1498
          %v1521 = vpop.permute.xlu0 %1520
          %1524 = vset.pattern.permute.xlu0 0
          %1525 = vperm.xlu0 %1524, %v1499
          %v1526 = vpop.permute.xlu0 %1525
          %1529 = vset.pattern.permute.xlu0 0
          %1530 = vperm.xlu0 %1529, %v1500
          %v1531 = vpop.permute.xlu0 %1530
          %1534 = vset.pattern.permute.xlu0 0
          %1535 = vperm.xlu0 %1534, %v1501
          %v1536 = vpop.permute.xlu0 %1535
          %1539 = vset.pattern.permute.xlu0 0
          %1540 = vperm.xlu0 %1539, %v1502
          %v1541 = vpop.permute.xlu0 %1540
          %1544 = vset.pattern.permute.xlu0 0
          %1545 = vperm.xlu0 %1544, %v1503
          %v1546 = vpop.permute.xlu0 %1545
          %1549 = vset.pattern.permute.xlu0 0
          %1550 = vperm.xlu0 %1549, %v1504
          %v1551 = vpop.permute.xlu0 %1550
          %v1553 = vmul.f32 %v1516, %v1505
          %v1554 = vmul.f32 %v1521, %v1506
          %v1555 = vmul.f32 %v1526, %v1507
          %v1556 = vmul.f32 %v1531, %v1508
          %v1557 = vmul.f32 %v1536, %v1509
          %v1558 = vmul.f32 %v1541, %v1510
          %v1559 = vmul.f32 %v1546, %v1511
          %v1560 = vmul.f32 %v1551, %v1512
          %v1561 = vsel %vm1489, 1, 0
          %v1562 = vsel %vm1490, 1, 0
          %v1563 = vsel %vm1491, 1, 0
          %v1564 = vsel %vm1492, 1, 0
          %v1565 = vsel %vm1493, 1, 0
          %v1566 = vsel %vm1494, 1, 0
          %v1567 = vsel %vm1495, 1, 0
          %v1568 = vsel %vm1496, 1, 0
          %vm1569 = vcmp.eq.s32.totalorder %v1561, 1
          %vm1570 = vcmp.eq.s32.totalorder %v1562, 1
          %vm1571 = vcmp.eq.s32.totalorder %v1563, 1
          %vm1572 = vcmp.eq.s32.totalorder %v1564, 1
          %vm1573 = vcmp.eq.s32.totalorder %v1565, 1
          %vm1574 = vcmp.eq.s32.totalorder %v1566, 1
          %vm1575 = vcmp.eq.s32.totalorder %v1567, 1
          %vm1576 = vcmp.eq.s32.totalorder %v1568, 1
          %v1577 = vsel %vm1569, %v1553, 0.0
          %v1578 = vsel %vm1570, %v1554, 0.0
          %v1579 = vsel %vm1571, %v1555, 0.0
          %v1580 = vsel %vm1572, %v1556, 0.0
          %v1581 = vsel %vm1573, %v1557, 0.0
          %v1582 = vsel %vm1574, %v1558, 0.0
          %v1583 = vsel %vm1575, %v1559, 0.0
          %v1584 = vsel %vm1576, %v1560, 0.0
          %v1585 = vpack.c.bf16 %v1578, %v1577
          %v1586 = vpack.c.bf16 %v1580, %v1579
          %v1587 = vpack.c.bf16 %v1582, %v1581
          %v1588 = vpack.c.bf16 %v1584, %v1583
          %s1589 = sld [smem:[#allocation8 + %s55]]
          %p1590 = scmp.eq.s32.totalorder %s1589, 1
          // Predicated region
          $region57: #{tpu_custom_call.1} parent=55 // pred_check
            %p1591 = pneg %p1590
          $region58: #{tpu_custom_call.1} parent=55 // pred_check_branch
            %1593 = sbr.rel (%p1591) target = $region60
          $region59: #{tpu_custom_call.1} parent=55 // pred_region
            %v1598 = vunpack.c.l.b16 %v1585
            %v1599 = vunpack.c.h.b16 %v1585
            %v1600 = vunpack.c.l.b16 %v1586
            %v1601 = vunpack.c.h.b16 %v1586
            %v1602 = vunpack.c.l.b16 %v1587
            %v1603 = vunpack.c.h.b16 %v1587
            %v1604 = vunpack.c.l.b16 %v1588
            %v1605 = vunpack.c.h.b16 %v1588
            %v1606 = vpack.c.b16 %v1598, %v1598
            %v1607 = vpack.c.b16 %v1599, %v1599
            %v1608 = vpack.c.b16 %v1600, %v1600
            %v1609 = vpack.c.b16 %v1601, %v1601
            %v1610 = vpack.c.b16 %v1602, %v1602
            %v1611 = vpack.c.b16 %v1603, %v1603
            %v1612 = vpack.c.b16 %v1604, %v1604
            %v1613 = vpack.c.b16 %v1605, %v1605
            %1622 = vst [vmem:[%s352] sm:$0xf] %v1606
            %1623 = vst [vmem:[%s352 + $0x4] sm:$0xf] %v1607
            %1624 = vst [vmem:[%s352 + $0x8] sm:$0xf] %v1608
            %1625 = vst [vmem:[%s352 + $0xc] sm:$0xf] %v1609
            %1626 = vst [vmem:[%s352 + $0x10] sm:$0xf] %v1610
            %1627 = vst [vmem:[%s352 + $0x14] sm:$0xf] %v1611
            %1628 = vst [vmem:[%s352 + $0x18] sm:$0xf] %v1612
            %1629 = vst [vmem:[%s352 + $0x1c] sm:$0xf] %v1613
          $region60: #{tpu_custom_call.1} parent=55 // pred_fallthru
            _
          %p1630 = scmp.ne.s32.totalorder %s1589, 1
          // Predicated region
          $region61: #{tpu_custom_call.1} parent=55 // pred_check
            %p1631 = pneg %p1630
          $region62: #{tpu_custom_call.1} parent=55 // pred_check_branch
            %1633 = sbr.rel (%p1631) target = $region64
          $region63: #{tpu_custom_call.1} parent=55 // pred_region
            %v1634 = vld [vmem:[%s352] sm:$0xf]
            %v1635 = vld [vmem:[%s352 + $0x4] sm:$0xf]
            %v1636 = vld [vmem:[%s352 + $0x8] sm:$0xf]
            %v1637 = vld [vmem:[%s352 + $0xc] sm:$0xf]
            %v1638 = vld [vmem:[%s352 + $0x10] sm:$0xf]
            %v1639 = vld [vmem:[%s352 + $0x14] sm:$0xf]
            %v1640 = vld [vmem:[%s352 + $0x18] sm:$0xf]
            %v1641 = vld [vmem:[%s352 + $0x1c] sm:$0xf]
            %v1646 = vunpack.c.l.b16 %v1585
            %v1647 = vunpack.c.h.b16 %v1585
            %v1648 = vunpack.c.l.b16 %v1586
            %v1649 = vunpack.c.h.b16 %v1586
            %v1650 = vunpack.c.l.b16 %v1587
            %v1651 = vunpack.c.h.b16 %v1587
            %v1652 = vunpack.c.l.b16 %v1588
            %v1653 = vunpack.c.h.b16 %v1588
            %v1654 = vpack.c.b16 %v1646, %v1646
            %v1655 = vpack.c.b16 %v1647, %v1647
            %v1656 = vpack.c.b16 %v1648, %v1648
            %v1657 = vpack.c.b16 %v1649, %v1649
            %v1658 = vpack.c.b16 %v1650, %v1650
            %v1659 = vpack.c.b16 %v1651, %v1651
            %v1660 = vpack.c.b16 %v1652, %v1652
            %v1661 = vpack.c.b16 %v1653, %v1653
            %v1670 = vadd.bf16 %v1634, %v1654
            %v1671 = vadd.bf16 %v1635, %v1655
            %v1672 = vadd.bf16 %v1636, %v1656
            %v1673 = vadd.bf16 %v1637, %v1657
            %v1674 = vadd.bf16 %v1638, %v1658
            %v1675 = vadd.bf16 %v1639, %v1659
            %v1676 = vadd.bf16 %v1640, %v1660
            %v1677 = vadd.bf16 %v1641, %v1661
            %1678 = vst [vmem:[%s352] sm:$0xf] %v1670
            %1679 = vst [vmem:[%s352 + $0x4] sm:$0xf] %v1671
            %1680 = vst [vmem:[%s352 + $0x8] sm:$0xf] %v1672
            %1681 = vst [vmem:[%s352 + $0xc] sm:$0xf] %v1673
            %1682 = vst [vmem:[%s352 + $0x10] sm:$0xf] %v1674
            %1683 = vst [vmem:[%s352 + $0x14] sm:$0xf] %v1675
            %1684 = vst [vmem:[%s352 + $0x18] sm:$0xf] %v1676
            %1685 = vst [vmem:[%s352 + $0x1c] sm:$0xf] %v1677
          $region64: #{tpu_custom_call.1} parent=55 // pred_fallthru
            _
        $region56: #{tpu_custom_call.1} parent=35 // pred_fallthru
          _
        %s1686 = sand.u32 %s189, 1
        %s1687 = scalar_lea.sflag [#allocation11], %s1686
        %s1688 = sand.u32 %s189, 1
        %s1689 = smul.addr %s1688, 32
        %s1690 = scalar_lea.vmem [#allocation14], %s1689
        // Predicated region
        $region65: #{tpu_custom_call.1} parent=35 // pred_check
          %p1691 = pneg %p199
        $region66: #{tpu_custom_call.1} parent=35 // pred_check_branch
          %1693 = sbr.rel (%p1691) target = $region68
        $region67: #{tpu_custom_call.1} parent=35 // pred_region
          %s1694 = sld [smem:[#allocation5 + %s55]]
          %s1695 = smul.u32 8, %s1694
          %s1697 = ssub.s32 512, 512
          %1698 = vsyncadd %s1687, %s1697
          %s1699 = smul.addr %s1695, 64
          %s1700 = scalar_lea.hbm %s9, %s1699
          %s1701 = sshll.u32 %s1690, 4
          %s1702 = int_to_ptr.vmem [resolvable:$true] %s1701
          %1707 = dma.vmem_to_hbm [thread:$0]  %s1702, 512, %s1700, %s1687, 64, 64, 4
        $region68: #{tpu_custom_call.1} parent=35 // pred_fallthru
          _
      $region36: #{tpu_custom_call.1} parent=5 // pred_fallthru
        _
      %p1708 = scmp.le.s32.totalorder 2, %s46
      // Predicated region
      $region69: #{tpu_custom_call.1} parent=5 // pred_check
        %p1709 = pneg %p1708
      $region70: #{tpu_custom_call.1} parent=5 // pred_check_branch
        %1711 = sbr.rel (%p1709) target = $region72
      $region71: #{tpu_custom_call.1} parent=5 // pred_region
        %s1712 = ssub.s32 %s46, 2
        // Predicated region
        $region73: #{tpu_custom_call.1} parent=71 // pred_check
          %p1713 = pneg %p205
        $region74: #{tpu_custom_call.1} parent=71 // pred_check_branch
          %1715 = sbr.rel (%p1713) target = $region76
        $region75: #{tpu_custom_call.1} parent=71 // pred_region
          %s1716 = sand.u32 %s190, 1
          %s1717 = scalar_lea.sflag [#allocation11], %s1716
          %s1718 = sand.u32 %s190, 1
          %s1719 = smul.addr %s1718, 32
          %s1720 = scalar_lea.vmem [#allocation14], %s1719
          %1721 = dma.done %s1717, 512
        $region76: #{tpu_custom_call.1} parent=71 // pred_fallthru
          _
      $region72: #{tpu_custom_call.1} parent=5 // pred_fallthru
        _
    $region6: #{tpu_custom_call.1} parent=1 // loop_footer
      %s50 = sadd.s32 1, %s46
    $region7: #{tpu_custom_call.1} parent=1 // loop_footer_branch
      %45 = sbr.rel target = $region3
    $region8: #{tpu_custom_call.1} parent=1 // loop_exit
      _
    %1722 = vsyncpa [#allocation10], 1
    %s1723 = scalar_lea.sflag [#allocation10], 1
    %1724 = vsyncpa %s1723, 1
    %1725 = vsyncpa [#allocation13], 1
    %s1726 = scalar_lea.sflag [#allocation13], 1
    %1727 = vsyncpa %s1726, 1
    %1728 = vsyncpa [#allocation11], 1
    %s1729 = scalar_lea.sflag [#allocation11], 1
    %1730 = vsyncpa %s1729, 1

</llo_original>
